<compile_context>
chip_gen: v7x
topology: tpu7x:2x2x1
jax: 0.10.0
libtpu: 0.0.40
codegen_flags: <defaults>
</compile_context>

<pallas_src>
import math

import numpy as np
import jax
import jax.numpy as jnp
from jax.experimental import pallas as pl

# ----------------------- model configuration (small) ------------------------
# SparseNet(n=[32], k=[8], outChannels=[4], c_k=[10], inputSize=(1,16,16),
#           outputSize=10, weightSparsity=0.5, useBatchNorm=True), eval mode.
BATCH = 2
IN_C, IN_H, IN_W = 1, 16, 16
KSIZE = 5
OUT_CHANNELS = 4
C_K = 10
N_HIDDEN = 32
K_HIDDEN = 8
OUT_SIZE = 10
K_INFERENCE_FACTOR = 1.0
WEIGHT_SPARSITY = 0.5
BN_EPS = 1e-5

CONV_OH = IN_H - KSIZE + 1          # 12
CONV_OW = IN_W - KSIZE + 1          # 12
POOL_OH = CONV_OH // 2              # 6
POOL_OW = CONV_OW // 2              # 6
CNN_FEATURES = OUT_CHANNELS * POOL_OH * POOL_OW   # 144
IN_FLAT = IN_C * IN_H * IN_W                      # 256

C_K_EFF = min(int(round(C_K * K_INFERENCE_FACTOR)), CNN_FEATURES)
K_EFF = min(int(round(K_HIDDEN * K_INFERENCE_FACTOR)), N_HIDDEN)


# ------------------------------ kernel helpers -------------------------------
def _kwinners(x, k):
    """Per-row k-winners: keep values >= the k-th largest, zero the rest.

    Rank-count formulation: rank_i = #{j : x_j > x_i}; keep iff rank_i < k.
    One VPU broadcast-compare + one XLU reduce (no serialized k-long max chain).
    Per the SparseNet docstring, k >= n degenerates to a plain ReLU layer.
    """
    n = x.shape[-1]
    if k >= n:
        return jnp.maximum(x, 0.0)
    gt = jnp.where(x[:, None, :] > x[:, :, None], 1.0, 0.0)   # (B, n, n)
    rank = jnp.sum(gt, axis=-1)                               # (B, n)
    return jnp.where(rank < float(k), x, jnp.zeros_like(x))


# --------------------------------- fused kernel ------------------------------
def _sparse_net_kernel(x_ref, wp_ref, cs_ref, cb_ref,
                       w1_ref, b1_ref, w2_ref, b2_ref, o_ref):
    # x: (B, Cin*H*W); wp: (4, Cin*H*W, CNN_FEATURES) conv+pool-offset matrices.
    x = x_ref[...]

    # conv5x5 + 2x2 maxpool + NCHW flatten: 4 MXU matmuls + elementwise max.
    p = jnp.dot(x, wp_ref[0], preferred_element_type=jnp.float32)
    for q in range(1, 4):
        p = jnp.maximum(p, jnp.dot(x, wp_ref[q],
                                   preferred_element_type=jnp.float32))

    # conv bias + eval BatchNorm2d folded into a per-feature affine.
    feat = p * cs_ref[...] + cb_ref[...]
    feat = _kwinners(feat, C_K_EFF)                 # CNNSDR2d k-winners

    # LinearSDR: linear (+ eval BatchNorm1d folded into w/b) -> k-winners.
    h = jnp.dot(feat, w1_ref[...], preferred_element_type=jnp.float32) + b1_ref[...]
    h = _kwinners(h, K_EFF)

    # fc + LogSoftmax(dim=1)
    z = jnp.dot(h, w2_ref[...], preferred_element_type=jnp.float32) + b2_ref[...]
    zmax = jnp.max(z, axis=-1, keepdims=True)
    lse = jnp.log(jnp.sum(jnp.exp(z - zmax), axis=-1, keepdims=True)) + zmax
    o_ref[...] = z - lse


def _full_spec(shape):
    # whole-array block (tiny operands, everything resident in VMEM)
    return pl.BlockSpec(shape, lambda: (0,) * len(shape))


# ------------------------------ forward wrapper -------------------------------
def sparse_net_forward(x, prepared):
    wp, cnn_scale, cnn_bias, w1_eff, b1_eff, w2t, b2r = prepared
    B = x.shape[0]
    x2d = x.astype(jnp.float32).reshape(B, IN_FLAT)   # free bitcast under jit

    return pl.pallas_call(
        _sparse_net_kernel,
        out_shape=jax.ShapeDtypeStruct((B, OUT_SIZE), jnp.float32),
        in_specs=[
            _full_spec((B, IN_FLAT)),
            _full_spec(wp.shape),
            _full_spec(cnn_scale.shape),
            _full_spec(cnn_bias.shape),
            _full_spec(w1_eff.shape),
            _full_spec(b1_eff.shape),
            _full_spec(w2t.shape),
            _full_spec(b2r.shape),
        ],
        out_specs=_full_spec((B, OUT_SIZE)),
    )(x2d, wp, cnn_scale, cnn_bias, w1_eff, b1_eff, w2t, b2r)


# -------------------- one-time host-side parameter preparation ----------------
def prepare_params(params):
    """Fold conv+im2col+maxpool-selection+flatten and eval-BatchNorm into the
    weights, once, outside the traced/executed forward path."""
    (wc, bc, g2, be2, m2, v2, w1, b1, g1, be1, m1, v1, w2, b2) = [
        np.asarray(p, np.float32) for p in params
    ]

    HW = IN_H * IN_W
    # wp[q][cin*H*W + h*W + w, c*36 + ph*6 + pw] with q = dh*2 + dw encodes
    #   conv_nobias[b, c, 2ph+dh, 2pw+dw] = (x2d @ wp[q])[b, feature]
    wp = np.zeros((4, IN_C * HW, CNN_FEATURES), np.float32)
    for dh in range(2):
        for dw in range(2):
            q = dh * 2 + dw
            for c in range(OUT_CHANNELS):
                for ph in range(POOL_OH):
                    for pw in range(POOL_OW):
                        f = c * (POOL_OH * POOL_OW) + ph * POOL_OW + pw
                        oh = 2 * ph + dh
                        ow = 2 * pw + dw
                        for cin in range(IN_C):
                            for kh in range(KSIZE):
                                for kw in range(KSIZE):
                                    r = cin * HW + (oh + kh) * IN_W + (ow + kw)
                                    wp[q, r, f] += wc[c, cin, kh, kw]

    # eval BatchNorm2d (applied after maxpool) + conv bias, as a per-feature
    # affine applied *after* the in-kernel max (exact for any gamma sign).
    a2 = g2 / np.sqrt(v2 + BN_EPS)                         # (OUT_CHANNELS,)
    ch = np.arange(CNN_FEATURES) // (POOL_OH * POOL_OW)    # channel of each feature
    cnn_scale = a2[ch].reshape(1, CNN_FEATURES)
    cnn_bias = (a2 * (bc - m2) + be2)[ch].reshape(1, CNN_FEATURES)

    # LinearSDR: eval BatchNorm1d folded directly into weight/bias.
    a1 = g1 / np.sqrt(v1 + BN_EPS)                         # (N_HIDDEN,)
    w1_eff = (w1 * a1[:, None]).T                          # (CNN_FEATURES, N_HIDDEN)
    b1_eff = (a1 * (b1 - m1) + be1).reshape(1, N_HIDDEN)

    w2t = w2.T                                             # (N_HIDDEN, OUT_SIZE)
    b2r = b2.reshape(1, OUT_SIZE)

    return tuple(jnp.asarray(a, jnp.float32)
                 for a in (wp, cnn_scale, cnn_bias, w1_eff, b1_eff, w2t, b2r))


# ------------------------- deterministic parameter init -----------------------
def init_params(key):
    k1, k2, k3, k4, k5, k6, k7 = jax.random.split(key, 7)

    def _u(k, shape, fan_in):
        bound = 1.0 / math.sqrt(fan_in)
        return jax.random.uniform(k, shape, jnp.float32, -bound, bound)

    fan_c = IN_C * KSIZE * KSIZE
    wc = _u(k1, (OUT_CHANNELS, IN_C, KSIZE, KSIZE), fan_c)
    bc = _u(k2, (OUT_CHANNELS,), fan_c)
    # fresh eval BatchNorm2d stats / affine
    g2, be2 = jnp.ones((OUT_CHANNELS,)), jnp.zeros((OUT_CHANNELS,))
    m2, v2 = jnp.zeros((OUT_CHANNELS,)), jnp.ones((OUT_CHANNELS,))

    w1 = _u(k3, (N_HIDDEN, CNN_FEATURES), CNN_FEATURES)
    # weightSparsity: only `WEIGHT_SPARSITY` fraction of weights may be nonzero
    mask = (jax.random.uniform(k4, w1.shape) < WEIGHT_SPARSITY).astype(jnp.float32)
    w1 = w1 * mask
    b1 = _u(k5, (N_HIDDEN,), CNN_FEATURES)
    # fresh eval BatchNorm1d stats / affine
    g1, be1 = jnp.ones((N_HIDDEN,)), jnp.zeros((N_HIDDEN,))
    m1, v1 = jnp.zeros((N_HIDDEN,)), jnp.ones((N_HIDDEN,))

    w2 = _u(k6, (OUT_SIZE, N_HIDDEN), N_HIDDEN)
    b2 = _u(k7, (OUT_SIZE,), N_HIDDEN)
    return (wc, bc, g2, be2, m2, v2, w1, b1, g1, be1, m1, v1, w2, b2)


# --------------------------- pure-JAX reference (check) -----------------------
def _ref_kwinners(x, k):
    if k >= x.shape[-1]:
        return jnp.maximum(x, 0.0)
    thr = jnp.sort(x, axis=-1)[:, -k][:, None]
    return jnp.where(x >= thr, x, 0.0)


def reference_forward(x, params):
    (wc, bc, g2, be2, m2, v2, w1, b1, g1, be1, m1, v1, w2, b2) = params
    x = x.astype(jnp.float32)
    conv = jax.lax.conv_general_dilated(
        x, wc, (1, 1), "VALID", dimension_numbers=("NCHW", "OIHW", "NCHW")
    ) + bc.reshape(1, -1, 1, 1)
    pooled = jax.lax.reduce_window(
        conv, -jnp.inf, jax.lax.max, (1, 1, 2, 2), (1, 1, 2, 2), "VALID"
    )
    pooled = (g2.reshape(1, -1, 1, 1) * (pooled - m2.reshape(1, -1, 1, 1))
              / jnp.sqrt(v2.reshape(1, -1, 1, 1) + BN_EPS)
              + be2.reshape(1, -1, 1, 1))
    feat = pooled.reshape(x.shape[0], -1)
    feat = _ref_kwinners(feat, C_K_EFF)
    h = feat @ w1.T + b1
    h = g1 * (h - m1) / jnp.sqrt(v1 + BN_EPS) + be1
    h = _ref_kwinners(h, K_EFF)
    z = h @ w2.T + b2
    return jax.nn.log_softmax(z, axis=1)


# ------------------------------------ main ------------------------------------
if __name__ == "__main__":
    key = jax.random.PRNGKey(0)
    k_in, k_par = jax.random.split(key)
    x = jax.random.normal(k_in, (BATCH, IN_C, IN_H, IN_W), dtype=jnp.float32)
    params = init_params(k_par)
    prepared = prepare_params(params)          # one-time weight folding

    forward = jax.jit(sparse_net_forward)
    out = jax.block_until_ready(forward(x, prepared))

    ref = jax.block_until_ready(reference_forward(x, params))
    np.testing.assert_allclose(np.asarray(out), np.asarray(ref),
                               rtol=1e-4, atol=1e-4)

    assert out.shape == (BATCH, OUT_SIZE)
    print("KERNEL_OK")
</pallas_src>

<mosaic_0001>
module attributes {stable_mosaic.version = 11 : i64} {
  func.func @_sparse_net_kernel(%arg0: memref<2x256xf32, #tpu.memory_space<vmem>>, %arg1: memref<4x256x144xf32, #tpu.memory_space<vmem>>, %arg2: memref<1x144xf32, #tpu.memory_space<vmem>>, %arg3: memref<1x144xf32, #tpu.memory_space<vmem>>, %arg4: memref<144x32xf32, #tpu.memory_space<vmem>>, %arg5: memref<1x32xf32, #tpu.memory_space<vmem>>, %arg6: memref<32x10xf32, #tpu.memory_space<vmem>>, %arg7: memref<1x10xf32, #tpu.memory_space<vmem>>, %arg8: memref<2x10xf32, #tpu.memory_space<vmem>>) attributes {dimension_semantics = [], scalar_prefetch = 0 : i64, scratch_operands = 0 : i64, tpu.core_type = #tpu.core_type<tc>} {
    %c0 = arith.constant 0 : index
    %c0_0 = arith.constant 0 : index
    %0 = vector.load %arg0[%c0, %c0_0] : memref<2x256xf32, #tpu.memory_space<vmem>>, vector<2x256xf32>
    %c0_1 = arith.constant 0 : index
    %c0_2 = arith.constant 0 : index
    %c0_3 = arith.constant 0 : index
    %1 = vector.load %arg1[%c0_1, %c0_2, %c0_3] : memref<4x256x144xf32, #tpu.memory_space<vmem>>, vector<1x256x144xf32>
    %2 = vector.shape_cast %1 : vector<1x256x144xf32> to vector<256x144xf32>
    %cst = arith.constant dense<0.000000e+00> : vector<2x144xf32>
    %3 = tpu.matmul %0, %2, %cst {dimension_numbers = #tpu.dot_dimension_numbers<[1], [0], [0], [1], [0, 0, 1, 1], [], []>} : vector<2x256xf32>, vector<256x144xf32>, vector<2x144xf32> -> vector<2x144xf32>
    %c1 = arith.constant 1 : index
    %c0_4 = arith.constant 0 : index
    %c0_5 = arith.constant 0 : index
    %4 = vector.load %arg1[%c1, %c0_4, %c0_5] : memref<4x256x144xf32, #tpu.memory_space<vmem>>, vector<1x256x144xf32>
    %5 = vector.shape_cast %4 : vector<1x256x144xf32> to vector<256x144xf32>
    %cst_6 = arith.constant dense<0.000000e+00> : vector<2x144xf32>
    %6 = tpu.matmul %0, %5, %cst_6 {dimension_numbers = #tpu.dot_dimension_numbers<[1], [0], [0], [1], [0, 0, 1, 1], [], []>} : vector<2x256xf32>, vector<256x144xf32>, vector<2x144xf32> -> vector<2x144xf32>
    %7 = arith.maximumf %3, %6 : vector<2x144xf32>
    %c2 = arith.constant 2 : index
    %c0_7 = arith.constant 0 : index
    %c0_8 = arith.constant 0 : index
    %8 = vector.load %arg1[%c2, %c0_7, %c0_8] : memref<4x256x144xf32, #tpu.memory_space<vmem>>, vector<1x256x144xf32>
    %9 = vector.shape_cast %8 : vector<1x256x144xf32> to vector<256x144xf32>
    %cst_9 = arith.constant dense<0.000000e+00> : vector<2x144xf32>
    %10 = tpu.matmul %0, %9, %cst_9 {dimension_numbers = #tpu.dot_dimension_numbers<[1], [0], [0], [1], [0, 0, 1, 1], [], []>} : vector<2x256xf32>, vector<256x144xf32>, vector<2x144xf32> -> vector<2x144xf32>
    %11 = arith.maximumf %7, %10 : vector<2x144xf32>
    %c3 = arith.constant 3 : index
    %c0_10 = arith.constant 0 : index
    %c0_11 = arith.constant 0 : index
    %12 = vector.load %arg1[%c3, %c0_10, %c0_11] : memref<4x256x144xf32, #tpu.memory_space<vmem>>, vector<1x256x144xf32>
    %13 = vector.shape_cast %12 : vector<1x256x144xf32> to vector<256x144xf32>
    %cst_12 = arith.constant dense<0.000000e+00> : vector<2x144xf32>
    %14 = tpu.matmul %0, %13, %cst_12 {dimension_numbers = #tpu.dot_dimension_numbers<[1], [0], [0], [1], [0, 0, 1, 1], [], []>} : vector<2x256xf32>, vector<256x144xf32>, vector<2x144xf32> -> vector<2x144xf32>
    %15 = arith.maximumf %11, %14 : vector<2x144xf32>
    %c0_13 = arith.constant 0 : index
    %c0_14 = arith.constant 0 : index
    %16 = vector.load %arg2[%c0_13, %c0_14] : memref<1x144xf32, #tpu.memory_space<vmem>>, vector<1x144xf32>
    %17 = vector.broadcast %16 : vector<1x144xf32> to vector<2x144xf32>
    %18 = arith.mulf %15, %17 : vector<2x144xf32>
    %c0_15 = arith.constant 0 : index
    %c0_16 = arith.constant 0 : index
    %19 = vector.load %arg3[%c0_15, %c0_16] : memref<1x144xf32, #tpu.memory_space<vmem>>, vector<1x144xf32>
    %20 = vector.broadcast %19 : vector<1x144xf32> to vector<2x144xf32>
    %21 = arith.addf %18, %20 : vector<2x144xf32>
    %22 = vector.shape_cast %21 : vector<2x144xf32> to vector<2x1x144xf32>
    %23 = vector.shape_cast %21 : vector<2x144xf32> to vector<2x144x1xf32>
    %24 = vector.broadcast %22 : vector<2x1x144xf32> to vector<2x144x144xf32>
    %25 = vector.broadcast %23 : vector<2x144x1xf32> to vector<2x144x144xf32>
    %26 = arith.cmpf ogt, %24, %25 : vector<2x144x144xf32>
    %cst_17 = arith.constant 1.000000e+00 : f32
    %cst_18 = arith.constant 0.000000e+00 : f32
    %27 = vector.broadcast %cst_17 : f32 to vector<2x144x144xf32>
    %28 = vector.broadcast %cst_18 : f32 to vector<2x144x144xf32>
    %29 = arith.select %26, %27, %28 : vector<2x144x144xi1>, vector<2x144x144xf32>
    %cst_19 = arith.constant dense<0.000000e+00> : vector<2x144xf32>
    %30 = vector.multi_reduction <add>, %29, %cst_19 [2] : vector<2x144x144xf32> to vector<2x144xf32>
    %cst_20 = arith.constant 1.000000e+01 : f32
    %31 = vector.broadcast %cst_20 : f32 to vector<2x144xf32>
    %32 = arith.cmpf olt, %30, %31 : vector<2x144xf32>
    %cst_21 = arith.constant 0.000000e+00 : f32
    %33 = vector.broadcast %cst_21 : f32 to vector<2x144xf32>
    %34 = arith.select %32, %21, %33 : vector<2x144xi1>, vector<2x144xf32>
    %c0_22 = arith.constant 0 : index
    %c0_23 = arith.constant 0 : index
    %35 = vector.load %arg4[%c0_22, %c0_23] : memref<144x32xf32, #tpu.memory_space<vmem>>, vector<144x32xf32>
    %cst_24 = arith.constant dense<0.000000e+00> : vector<2x32xf32>
    %36 = tpu.matmul %34, %35, %cst_24 {dimension_numbers = #tpu.dot_dimension_numbers<[1], [0], [0], [1], [0, 0, 1, 1], [], []>} : vector<2x144xf32>, vector<144x32xf32>, vector<2x32xf32> -> vector<2x32xf32>
    %c0_25 = arith.constant 0 : index
    %c0_26 = arith.constant 0 : index
    %37 = vector.load %arg5[%c0_25, %c0_26] : memref<1x32xf32, #tpu.memory_space<vmem>>, vector<1x32xf32>
    %38 = vector.broadcast %37 : vector<1x32xf32> to vector<2x32xf32>
    %39 = arith.addf %36, %38 : vector<2x32xf32>
    %40 = vector.shape_cast %39 : vector<2x32xf32> to vector<2x1x32xf32>
    %41 = vector.shape_cast %39 : vector<2x32xf32> to vector<2x32x1xf32>
    %42 = vector.broadcast %40 : vector<2x1x32xf32> to vector<2x32x32xf32>
    %43 = vector.broadcast %41 : vector<2x32x1xf32> to vector<2x32x32xf32>
    %44 = arith.cmpf ogt, %42, %43 : vector<2x32x32xf32>
    %cst_27 = arith.constant 1.000000e+00 : f32
    %cst_28 = arith.constant 0.000000e+00 : f32
    %45 = vector.broadcast %cst_27 : f32 to vector<2x32x32xf32>
    %46 = vector.broadcast %cst_28 : f32 to vector<2x32x32xf32>
    %47 = arith.select %44, %45, %46 : vector<2x32x32xi1>, vector<2x32x32xf32>
    %cst_29 = arith.constant dense<0.000000e+00> : vector<2x32xf32>
    %48 = vector.multi_reduction <add>, %47, %cst_29 [2] : vector<2x32x32xf32> to vector<2x32xf32>
    %cst_30 = arith.constant 8.000000e+00 : f32
    %49 = vector.broadcast %cst_30 : f32 to vector<2x32xf32>
    %50 = arith.cmpf olt, %48, %49 : vector<2x32xf32>
    %cst_31 = arith.constant 0.000000e+00 : f32
    %51 = vector.broadcast %cst_31 : f32 to vector<2x32xf32>
    %52 = arith.select %50, %39, %51 : vector<2x32xi1>, vector<2x32xf32>
    %c0_32 = arith.constant 0 : index
    %c0_33 = arith.constant 0 : index
    %53 = vector.load %arg6[%c0_32, %c0_33] : memref<32x10xf32, #tpu.memory_space<vmem>>, vector<32x10xf32>
    %cst_34 = arith.constant dense<0.000000e+00> : vector<2x10xf32>
    %54 = tpu.matmul %52, %53, %cst_34 {dimension_numbers = #tpu.dot_dimension_numbers<[1], [0], [0], [1], [0, 0, 1, 1], [], []>} : vector<2x32xf32>, vector<32x10xf32>, vector<2x10xf32> -> vector<2x10xf32>
    %c0_35 = arith.constant 0 : index
    %c0_36 = arith.constant 0 : index
    %55 = vector.load %arg7[%c0_35, %c0_36] : memref<1x10xf32, #tpu.memory_space<vmem>>, vector<1x10xf32>
    %56 = vector.broadcast %55 : vector<1x10xf32> to vector<2x10xf32>
    %57 = arith.addf %54, %56 : vector<2x10xf32>
    %cst_37 = arith.constant dense<0xFF800000> : vector<2xf32>
    %58 = vector.multi_reduction <maximumf>, %57, %cst_37 [1] : vector<2x10xf32> to vector<2xf32>
    %59 = vector.shape_cast %58 : vector<2xf32> to vector<2x1xf32>
    %60 = vector.broadcast %59 : vector<2x1xf32> to vector<2x10xf32>
    %61 = arith.subf %57, %60 : vector<2x10xf32>
    %62 = math.exp %61 : vector<2x10xf32>
    %cst_38 = arith.constant dense<0.000000e+00> : vector<2xf32>
    %63 = vector.multi_reduction <add>, %62, %cst_38 [1] : vector<2x10xf32> to vector<2xf32>
    %64 = vector.shape_cast %63 : vector<2xf32> to vector<2x1xf32>
    %65 = math.log %64 : vector<2x1xf32>
    %66 = arith.addf %65, %59 : vector<2x1xf32>
    %67 = vector.broadcast %66 : vector<2x1xf32> to vector<2x10xf32>
    %68 = arith.subf %57, %67 : vector<2x10xf32>
    %c0_39 = arith.constant 0 : index
    %c0_40 = arith.constant 0 : index
    %69 = vector.load %arg8[%c0_39, %c0_40] : memref<2x10xf32, #tpu.memory_space<vmem>>, vector<2x10xf32>
    tpu.vector_store %arg8[%c0_39, %c0_40], %68 {strides = array<i32>} : memref<2x10xf32, #tpu.memory_space<vmem>>, vector<2x10xf32>,
    return
  }
}

</mosaic_0001>

<llo_original>
// kernel: sparse_net_forward.1
$region0: #{sparse_net_forward.1}
  #allocation0 [shape = 'u32[]', space=smem, size = 0x4, offset = 0x4, fixed_abs, tag = 'smem constant byte address 0x4 - core index']
  #allocation1 [shape = 'u32[144,128]{1,0:T(1,128)}', space=vmem, size = 0x12000, scoped, tag = 'internal scratch']
  %s0 = inlined_call_operand.vmem [shape: f32[2,256], index: 0, kind: input, shape index: {}]
  %s1 = inlined_call_operand.vmem [shape: f32[4,256,144], index: 1, kind: input, shape index: {}]
  %s2 = inlined_call_operand.vmem [shape: f32[1,144], index: 2, kind: input, shape index: {}]
  %s3 = inlined_call_operand.vmem [shape: f32[1,144], index: 3, kind: input, shape index: {}]
  %s4 = inlined_call_operand.vmem [shape: f32[144,32], index: 4, kind: input, shape index: {}]
  %s5 = inlined_call_operand.vmem [shape: f32[1,32], index: 5, kind: input, shape index: {}]
  %s6 = inlined_call_operand.vmem [shape: f32[32,10], index: 6, kind: input, shape index: {}]
  %s7 = inlined_call_operand.vmem [shape: f32[1,10], index: 7, kind: input, shape index: {}]
  %s8 = inlined_call_operand.hbm [shape: f32[2,10], index: 8, kind: output, shape index: {}]
  %s9 = sld [smem:[#allocation0]]
  $region42: #{sparse_net_forward.1} parent=0
    _
  %s11 = ssub.s32 1, %s9
  %s12 = scalar_select 0, %s11, %s9
  $region1: #{sparse_net_forward.1} parent=0
    #allocation2 [shape = 'u8[1024]{0}', space=vmem, size = 0x400, scoped, tag = 'output window, operand 0, single buffered']
    #allocation3 [shape = 's32[1]{0}', space=sflag, size = 0x4, scoped, tag = 'scoped memory for sparse_net_forward.1']
    %13 = vsyncpa [#allocation3], 0
    // Predicated region
    $region2: #{sparse_net_forward.1} parent=1 // pred_check
      _
    $region3: #{sparse_net_forward.1} parent=1 // pred_check_branch
      %15 = sbr.rel (0) target = $region5
    $region4: #{sparse_net_forward.1} parent=1 // pred_region
      _
    $region5: #{sparse_net_forward.1} parent=1 // pred_fallthru
      _
    // Predicated region
    $region6: #{sparse_net_forward.1} parent=1 // pred_check
      _
    $region7: #{sparse_net_forward.1} parent=1 // pred_check_branch
      %17 = sbr.rel (0) target = $region9
    $region8: #{sparse_net_forward.1} parent=1 // pred_region
      _
    $region9: #{sparse_net_forward.1} parent=1 // pred_fallthru
      _
    // Predicated region
    $region10: #{sparse_net_forward.1} parent=1 // pred_check
      _
    $region11: #{sparse_net_forward.1} parent=1 // pred_check_branch
      %19 = sbr.rel (0) target = $region13
    $region12: #{sparse_net_forward.1} parent=1 // pred_region
      _
    $region13: #{sparse_net_forward.1} parent=1 // pred_fallthru
      _
    // Predicated region
    $region14: #{sparse_net_forward.1} parent=1 // pred_check
      _
    $region15: #{sparse_net_forward.1} parent=1 // pred_check_branch
      %21 = sbr.rel (0) target = $region17
    $region16: #{sparse_net_forward.1} parent=1 // pred_region
      _
    $region17: #{sparse_net_forward.1} parent=1 // pred_fallthru
      _
    // Predicated region
    $region18: #{sparse_net_forward.1} parent=1 // pred_check
      _
    $region19: #{sparse_net_forward.1} parent=1 // pred_check_branch
      %23 = sbr.rel (0) target = $region21
    $region20: #{sparse_net_forward.1} parent=1 // pred_region
      _
    $region21: #{sparse_net_forward.1} parent=1 // pred_fallthru
      _
    // Predicated region
    $region22: #{sparse_net_forward.1} parent=1 // pred_check
      _
    $region23: #{sparse_net_forward.1} parent=1 // pred_check_branch
      %25 = sbr.rel (0) target = $region25
    $region24: #{sparse_net_forward.1} parent=1 // pred_region
      _
    $region25: #{sparse_net_forward.1} parent=1 // pred_fallthru
      _
    // Predicated region
    $region26: #{sparse_net_forward.1} parent=1 // pred_check
      _
    $region27: #{sparse_net_forward.1} parent=1 // pred_check_branch
      %27 = sbr.rel (0) target = $region29
    $region28: #{sparse_net_forward.1} parent=1 // pred_region
      _
    $region29: #{sparse_net_forward.1} parent=1 // pred_fallthru
      _
    // Predicated region
    $region30: #{sparse_net_forward.1} parent=1 // pred_check
      _
    $region31: #{sparse_net_forward.1} parent=1 // pred_check_branch
      %29 = sbr.rel (0) target = $region33
    $region32: #{sparse_net_forward.1} parent=1 // pred_region
      _
    $region33: #{sparse_net_forward.1} parent=1 // pred_fallthru
      _
    %v30 = vld [vmem:[%s0] sm:$0xf]
    %v31 = vld [vmem:[%s1] sm:$0xff]
    %v32 = vld [vmem:[%s1 + $0x8] sm:$0xff]
    %v33 = vld [vmem:[%s1 + $0x10] sm:$0xff]
    %v34 = vld [vmem:[%s1 + $0x18] sm:$0xff]
    %v35 = vld [vmem:[%s1 + $0x20] sm:$0xff]
    %v36 = vld [vmem:[%s1 + $0x28] sm:$0xff]
    %v37 = vld [vmem:[%s1 + $0x30] sm:$0xff]
    %v38 = vld [vmem:[%s1 + $0x38] sm:$0xff]
    %v39 = vld [vmem:[%s1 + $0x40] sm:$0xff]
    %v40 = vld [vmem:[%s1 + $0x48] sm:$0xff]
    %v41 = vld [vmem:[%s1 + $0x50] sm:$0xff]
    %v42 = vld [vmem:[%s1 + $0x58] sm:$0xff]
    %v43 = vld [vmem:[%s1 + $0x60] sm:$0xff]
    %v44 = vld [vmem:[%s1 + $0x68] sm:$0xff]
    %v45 = vld [vmem:[%s1 + $0x70] sm:$0xff]
    %v46 = vld [vmem:[%s1 + $0x78] sm:$0xff]
    %v47 = vld [vmem:[%s1 + $0x80] sm:$0xff]
    %v48 = vld [vmem:[%s1 + $0x88] sm:$0xff]
    %v49 = vld [vmem:[%s1 + $0x90] sm:$0xff]
    %v50 = vld [vmem:[%s1 + $0x98] sm:$0xff]
    %v51 = vld [vmem:[%s1 + $0xa0] sm:$0xff]
    %v52 = vld [vmem:[%s1 + $0xa8] sm:$0xff]
    %v53 = vld [vmem:[%s1 + $0xb0] sm:$0xff]
    %v54 = vld [vmem:[%s1 + $0xb8] sm:$0xff]
    %v55 = vld [vmem:[%s1 + $0xc0] sm:$0xff]
    %v56 = vld [vmem:[%s1 + $0xc8] sm:$0xff]
    %v57 = vld [vmem:[%s1 + $0xd0] sm:$0xff]
    %v58 = vld [vmem:[%s1 + $0xd8] sm:$0xff]
    %v59 = vld [vmem:[%s1 + $0xe0] sm:$0xff]
    %v60 = vld [vmem:[%s1 + $0xe8] sm:$0xff]
    %v61 = vld [vmem:[%s1 + $0xf0] sm:$0xff]
    %v62 = vld [vmem:[%s1 + $0xf8] sm:$0xff]
    %v63 = vld [vmem:[%s1 + $0x100] sm:$0xff]
    %v64 = vld [vmem:[%s1 + $0x108] sm:$0xff]
    %v65 = vld [vmem:[%s1 + $0x110] sm:$0xff]
    %v66 = vld [vmem:[%s1 + $0x118] sm:$0xff]
    %v67 = vld [vmem:[%s1 + $0x120] sm:$0xff]
    %v68 = vld [vmem:[%s1 + $0x128] sm:$0xff]
    %v69 = vld [vmem:[%s1 + $0x130] sm:$0xff]
    %v70 = vld [vmem:[%s1 + $0x138] sm:$0xff]
    %v71 = vld [vmem:[%s1 + $0x140] sm:$0xff]
    %v72 = vld [vmem:[%s1 + $0x148] sm:$0xff]
    %v73 = vld [vmem:[%s1 + $0x150] sm:$0xff]
    %v74 = vld [vmem:[%s1 + $0x158] sm:$0xff]
    %v75 = vld [vmem:[%s1 + $0x160] sm:$0xff]
    %v76 = vld [vmem:[%s1 + $0x168] sm:$0xff]
    %v77 = vld [vmem:[%s1 + $0x170] sm:$0xff]
    %v78 = vld [vmem:[%s1 + $0x178] sm:$0xff]
    %v79 = vld [vmem:[%s1 + $0x180] sm:$0xff]
    %v80 = vld [vmem:[%s1 + $0x188] sm:$0xff]
    %v81 = vld [vmem:[%s1 + $0x190] sm:$0xff]
    %v82 = vld [vmem:[%s1 + $0x198] sm:$0xff]
    %v83 = vld [vmem:[%s1 + $0x1a0] sm:$0xff]
    %v84 = vld [vmem:[%s1 + $0x1a8] sm:$0xff]
    %v85 = vld [vmem:[%s1 + $0x1b0] sm:$0xff]
    %v86 = vld [vmem:[%s1 + $0x1b8] sm:$0xff]
    %v87 = vld [vmem:[%s1 + $0x1c0] sm:$0xff]
    %v88 = vld [vmem:[%s1 + $0x1c8] sm:$0xff]
    %v89 = vld [vmem:[%s1 + $0x1d0] sm:$0xff]
    %v90 = vld [vmem:[%s1 + $0x1d8] sm:$0xff]
    %v91 = vld [vmem:[%s1 + $0x1e0] sm:$0xff]
    %v92 = vld [vmem:[%s1 + $0x1e8] sm:$0xff]
    %v93 = vld [vmem:[%s1 + $0x1f0] sm:$0xff]
    %v94 = vld [vmem:[%s1 + $0x1f8] sm:$0xff]
    %v97 = vunpack.c.l.s4 1983009808
    %v98 = vunpack.c.0.s8 %v97
    %v99 = vlaneseq
    %v100 = vshrl.u32 %v99, 7
    %v101 = vsub.s32 %v98, %v100
    %v102 = vrot.slane %v30, %v101
    %v103 = vcombine.high %v102, %v102
    %106 = vmatprep.subr.mxu0 %v32
    %107 = vmatpush1.msra.mxu0 %v31
    %108 = vmatprep.subr.mxu0 %v34
    %109 = vmatpush1.msra.mxu0 %v33
    %110 = vmatprep.subr.mxu0 %v36
    %111 = vmatpush1.msra.mxu0 %v35
    %112 = vmatprep.subr.mxu0 %v38
    %113 = vmatpush1.msra.mxu0 %v37
    %114 = vmatprep.subr.mxu0 %v40
    %115 = vmatpush1.msra.mxu0 %v39
    %116 = vmatprep.subr.mxu0 %v42
    %117 = vmatpush1.msra.mxu0 %v41
    %118 = vmatprep.subr.mxu0 %v44
    %119 = vmatpush1.msra.mxu0 %v43
    %120 = vmatprep.subr.mxu0 %v46
    %121 = vmatpush1.msra.mxu0 %v45
    %122 = vmatprep.subr.mxu0 %v48
    %123 = vmatpush1.msra.mxu0 %v47
    %124 = vmatprep.subr.mxu0 %v50
    %125 = vmatpush1.msra.mxu0 %v49
    %126 = vmatprep.subr.mxu0 %v52
    %127 = vmatpush1.msra.mxu0 %v51
    %128 = vmatprep.subr.mxu0 %v54
    %129 = vmatpush1.msra.mxu0 %v53
    %130 = vmatprep.subr.mxu0 %v56
    %131 = vmatpush1.msra.mxu0 %v55
    %132 = vmatprep.subr.mxu0 %v58
    %133 = vmatpush1.msra.mxu0 %v57
    %134 = vmatprep.subr.mxu0 %v60
    %135 = vmatpush1.msra.mxu0 %v59
    %136 = vmatprep.subr.mxu0 %v62
    %137 = vmatpush1.msra.mxu0 %v61
    %138 = vmatprep.subr.mxu0 %v64
    %139 = vmatpush1.msra.mxu0 %v63
    %140 = vmatprep.subr.mxu0 %v66
    %141 = vmatpush1.msra.mxu0 %v65
    %142 = vmatprep.subr.mxu0 %v68
    %143 = vmatpush1.msra.mxu0 %v67
    %144 = vmatprep.subr.mxu0 %v70
    %145 = vmatpush1.msra.mxu0 %v69
    %146 = vmatprep.subr.mxu0 %v72
    %147 = vmatpush1.msra.mxu0 %v71
    %148 = vmatprep.subr.mxu0 %v74
    %149 = vmatpush1.msra.mxu0 %v73
    %150 = vmatprep.subr.mxu0 %v76
    %151 = vmatpush1.msra.mxu0 %v75
    %152 = vmatprep.subr.mxu0 %v78
    %153 = vmatpush1.msra.mxu0 %v77
    %154 = vmatprep.subr.mxu0 %v80
    %155 = vmatpush1.msra.mxu0 %v79
    %156 = vmatprep.subr.mxu0 %v82
    %157 = vmatpush1.msra.mxu0 %v81
    %158 = vmatprep.subr.mxu0 %v84
    %159 = vmatpush1.msra.mxu0 %v83
    %160 = vmatprep.subr.mxu0 %v86
    %161 = vmatpush1.msra.mxu0 %v85
    %162 = vmatprep.subr.mxu0 %v88
    %163 = vmatpush1.msra.mxu0 %v87
    %164 = vmatprep.subr.mxu0 %v90
    %165 = vmatpush1.msra.mxu0 %v89
    %166 = vmatprep.subr.mxu0 %v92
    %167 = vmatpush1.msra.mxu0 %v91
    %168 = vmatprep.subr.mxu0 %v94
    %169 = vmatpush1.msra.mxu0 %v93
    %170 = vmatprep.mubr.f32.mxu0 %v103
    %171 = vmatmul.mubr.f32.gmra.mrb[0].mxu0 %v102
    %v172 = vpop.f32.mrb[0].mxu0
    %v173 = vadd.f32 0.0, %v172
    %v174 = vpop.f32.mrb[0].mxu0
    %v175 = vadd.f32 0.0, %v174
    %176 = vdwg.mxu0
    %s177 = scalar_lea.vmem %s1, 512
    %v178 = vld [vmem:[%s177] sm:$0xff]
    %v179 = vld [vmem:[%s177 + $0x8] sm:$0xff]
    %v180 = vld [vmem:[%s177 + $0x10] sm:$0xff]
    %v181 = vld [vmem:[%s177 + $0x18] sm:$0xff]
    %v182 = vld [vmem:[%s177 + $0x20] sm:$0xff]
    %v183 = vld [vmem:[%s177 + $0x28] sm:$0xff]
    %v184 = vld [vmem:[%s177 + $0x30] sm:$0xff]
    %v185 = vld [vmem:[%s177 + $0x38] sm:$0xff]
    %v186 = vld [vmem:[%s177 + $0x40] sm:$0xff]
    %v187 = vld [vmem:[%s177 + $0x48] sm:$0xff]
    %v188 = vld [vmem:[%s177 + $0x50] sm:$0xff]
    %v189 = vld [vmem:[%s177 + $0x58] sm:$0xff]
    %v190 = vld [vmem:[%s177 + $0x60] sm:$0xff]
    %v191 = vld [vmem:[%s177 + $0x68] sm:$0xff]
    %v192 = vld [vmem:[%s177 + $0x70] sm:$0xff]
    %v193 = vld [vmem:[%s177 + $0x78] sm:$0xff]
    %v194 = vld [vmem:[%s177 + $0x80] sm:$0xff]
    %v195 = vld [vmem:[%s177 + $0x88] sm:$0xff]
    %v196 = vld [vmem:[%s177 + $0x90] sm:$0xff]
    %v197 = vld [vmem:[%s177 + $0x98] sm:$0xff]
    %v198 = vld [vmem:[%s177 + $0xa0] sm:$0xff]
    %v199 = vld [vmem:[%s177 + $0xa8] sm:$0xff]
    %v200 = vld [vmem:[%s177 + $0xb0] sm:$0xff]
    %v201 = vld [vmem:[%s177 + $0xb8] sm:$0xff]
    %v202 = vld [vmem:[%s177 + $0xc0] sm:$0xff]
    %v203 = vld [vmem:[%s177 + $0xc8] sm:$0xff]
    %v204 = vld [vmem:[%s177 + $0xd0] sm:$0xff]
    %v205 = vld [vmem:[%s177 + $0xd8] sm:$0xff]
    %v206 = vld [vmem:[%s177 + $0xe0] sm:$0xff]
    %v207 = vld [vmem:[%s177 + $0xe8] sm:$0xff]
    %v208 = vld [vmem:[%s177 + $0xf0] sm:$0xff]
    %v209 = vld [vmem:[%s177 + $0xf8] sm:$0xff]
    %v210 = vld [vmem:[%s177 + $0x100] sm:$0xff]
    %v211 = vld [vmem:[%s177 + $0x108] sm:$0xff]
    %v212 = vld [vmem:[%s177 + $0x110] sm:$0xff]
    %v213 = vld [vmem:[%s177 + $0x118] sm:$0xff]
    %v214 = vld [vmem:[%s177 + $0x120] sm:$0xff]
    %v215 = vld [vmem:[%s177 + $0x128] sm:$0xff]
    %v216 = vld [vmem:[%s177 + $0x130] sm:$0xff]
    %v217 = vld [vmem:[%s177 + $0x138] sm:$0xff]
    %v218 = vld [vmem:[%s177 + $0x140] sm:$0xff]
    %v219 = vld [vmem:[%s177 + $0x148] sm:$0xff]
    %v220 = vld [vmem:[%s177 + $0x150] sm:$0xff]
    %v221 = vld [vmem:[%s177 + $0x158] sm:$0xff]
    %v222 = vld [vmem:[%s177 + $0x160] sm:$0xff]
    %v223 = vld [vmem:[%s177 + $0x168] sm:$0xff]
    %v224 = vld [vmem:[%s177 + $0x170] sm:$0xff]
    %v225 = vld [vmem:[%s177 + $0x178] sm:$0xff]
    %v226 = vld [vmem:[%s177 + $0x180] sm:$0xff]
    %v227 = vld [vmem:[%s177 + $0x188] sm:$0xff]
    %v228 = vld [vmem:[%s177 + $0x190] sm:$0xff]
    %v229 = vld [vmem:[%s177 + $0x198] sm:$0xff]
    %v230 = vld [vmem:[%s177 + $0x1a0] sm:$0xff]
    %v231 = vld [vmem:[%s177 + $0x1a8] sm:$0xff]
    %v232 = vld [vmem:[%s177 + $0x1b0] sm:$0xff]
    %v233 = vld [vmem:[%s177 + $0x1b8] sm:$0xff]
    %v234 = vld [vmem:[%s177 + $0x1c0] sm:$0xff]
    %v235 = vld [vmem:[%s177 + $0x1c8] sm:$0xff]
    %v236 = vld [vmem:[%s177 + $0x1d0] sm:$0xff]
    %v237 = vld [vmem:[%s177 + $0x1d8] sm:$0xff]
    %v238 = vld [vmem:[%s177 + $0x1e0] sm:$0xff]
    %v239 = vld [vmem:[%s177 + $0x1e8] sm:$0xff]
    %v240 = vld [vmem:[%s177 + $0x1f0] sm:$0xff]
    %v241 = vld [vmem:[%s177 + $0x1f8] sm:$0xff]
    %242 = vmatprep.subr.mxu0 %v179
    %243 = vmatpush1.msra.mxu0 %v178
    %244 = vmatprep.subr.mxu0 %v181
    %245 = vmatpush1.msra.mxu0 %v180
    %246 = vmatprep.subr.mxu0 %v183
    %247 = vmatpush1.msra.mxu0 %v182
    %248 = vmatprep.subr.mxu0 %v185
    %249 = vmatpush1.msra.mxu0 %v184
    %250 = vmatprep.subr.mxu0 %v187
    %251 = vmatpush1.msra.mxu0 %v186
    %252 = vmatprep.subr.mxu0 %v189
    %253 = vmatpush1.msra.mxu0 %v188
    %254 = vmatprep.subr.mxu0 %v191
    %255 = vmatpush1.msra.mxu0 %v190
    %256 = vmatprep.subr.mxu0 %v193
    %257 = vmatpush1.msra.mxu0 %v192
    %258 = vmatprep.subr.mxu0 %v195
    %259 = vmatpush1.msra.mxu0 %v194
    %260 = vmatprep.subr.mxu0 %v197
    %261 = vmatpush1.msra.mxu0 %v196
    %262 = vmatprep.subr.mxu0 %v199
    %263 = vmatpush1.msra.mxu0 %v198
    %264 = vmatprep.subr.mxu0 %v201
    %265 = vmatpush1.msra.mxu0 %v200
    %266 = vmatprep.subr.mxu0 %v203
    %267 = vmatpush1.msra.mxu0 %v202
    %268 = vmatprep.subr.mxu0 %v205
    %269 = vmatpush1.msra.mxu0 %v204
    %270 = vmatprep.subr.mxu0 %v207
    %271 = vmatpush1.msra.mxu0 %v206
    %272 = vmatprep.subr.mxu0 %v209
    %273 = vmatpush1.msra.mxu0 %v208
    %274 = vmatprep.subr.mxu0 %v211
    %275 = vmatpush1.msra.mxu0 %v210
    %276 = vmatprep.subr.mxu0 %v213
    %277 = vmatpush1.msra.mxu0 %v212
    %278 = vmatprep.subr.mxu0 %v215
    %279 = vmatpush1.msra.mxu0 %v214
    %280 = vmatprep.subr.mxu0 %v217
    %281 = vmatpush1.msra.mxu0 %v216
    %282 = vmatprep.subr.mxu0 %v219
    %283 = vmatpush1.msra.mxu0 %v218
    %284 = vmatprep.subr.mxu0 %v221
    %285 = vmatpush1.msra.mxu0 %v220
    %286 = vmatprep.subr.mxu0 %v223
    %287 = vmatpush1.msra.mxu0 %v222
    %288 = vmatprep.subr.mxu0 %v225
    %289 = vmatpush1.msra.mxu0 %v224
    %290 = vmatprep.subr.mxu0 %v227
    %291 = vmatpush1.msra.mxu0 %v226
    %292 = vmatprep.subr.mxu0 %v229
    %293 = vmatpush1.msra.mxu0 %v228
    %294 = vmatprep.subr.mxu0 %v231
    %295 = vmatpush1.msra.mxu0 %v230
    %296 = vmatprep.subr.mxu0 %v233
    %297 = vmatpush1.msra.mxu0 %v232
    %298 = vmatprep.subr.mxu0 %v235
    %299 = vmatpush1.msra.mxu0 %v234
    %300 = vmatprep.subr.mxu0 %v237
    %301 = vmatpush1.msra.mxu0 %v236
    %302 = vmatprep.subr.mxu0 %v239
    %303 = vmatpush1.msra.mxu0 %v238
    %304 = vmatprep.subr.mxu0 %v241
    %305 = vmatpush1.msra.mxu0 %v240
    %306 = vmatprep.mubr.f32.mxu0 %v103
    %307 = vmatmul.mubr.f32.gmra.mrb[0].mxu0 %v102
    %v308 = vpop.f32.mrb[0].mxu0
    %v309 = vadd.f32 0.0, %v308
    %v310 = vpop.f32.mrb[0].mxu0
    %v311 = vadd.f32 0.0, %v310
    %312 = vdwg.mxu0
    %v313 = vmax.f32 %v173, %v309
    %v314 = vmax.f32 %v175, %v311
    %s315 = scalar_lea.vmem %s1, 1024
    %v316 = vld [vmem:[%s315] sm:$0xff]
    %v317 = vld [vmem:[%s315 + $0x8] sm:$0xff]
    %v318 = vld [vmem:[%s315 + $0x10] sm:$0xff]
    %v319 = vld [vmem:[%s315 + $0x18] sm:$0xff]
    %v320 = vld [vmem:[%s315 + $0x20] sm:$0xff]
    %v321 = vld [vmem:[%s315 + $0x28] sm:$0xff]
    %v322 = vld [vmem:[%s315 + $0x30] sm:$0xff]
    %v323 = vld [vmem:[%s315 + $0x38] sm:$0xff]
    %v324 = vld [vmem:[%s315 + $0x40] sm:$0xff]
    %v325 = vld [vmem:[%s315 + $0x48] sm:$0xff]
    %v326 = vld [vmem:[%s315 + $0x50] sm:$0xff]
    %v327 = vld [vmem:[%s315 + $0x58] sm:$0xff]
    %v328 = vld [vmem:[%s315 + $0x60] sm:$0xff]
    %v329 = vld [vmem:[%s315 + $0x68] sm:$0xff]
    %v330 = vld [vmem:[%s315 + $0x70] sm:$0xff]
    %v331 = vld [vmem:[%s315 + $0x78] sm:$0xff]
    %v332 = vld [vmem:[%s315 + $0x80] sm:$0xff]
    %v333 = vld [vmem:[%s315 + $0x88] sm:$0xff]
    %v334 = vld [vmem:[%s315 + $0x90] sm:$0xff]
    %v335 = vld [vmem:[%s315 + $0x98] sm:$0xff]
    %v336 = vld [vmem:[%s315 + $0xa0] sm:$0xff]
    %v337 = vld [vmem:[%s315 + $0xa8] sm:$0xff]
    %v338 = vld [vmem:[%s315 + $0xb0] sm:$0xff]
    %v339 = vld [vmem:[%s315 + $0xb8] sm:$0xff]
    %v340 = vld [vmem:[%s315 + $0xc0] sm:$0xff]
    %v341 = vld [vmem:[%s315 + $0xc8] sm:$0xff]
    %v342 = vld [vmem:[%s315 + $0xd0] sm:$0xff]
    %v343 = vld [vmem:[%s315 + $0xd8] sm:$0xff]
    %v344 = vld [vmem:[%s315 + $0xe0] sm:$0xff]
    %v345 = vld [vmem:[%s315 + $0xe8] sm:$0xff]
    %v346 = vld [vmem:[%s315 + $0xf0] sm:$0xff]
    %v347 = vld [vmem:[%s315 + $0xf8] sm:$0xff]
    %v348 = vld [vmem:[%s315 + $0x100] sm:$0xff]
    %v349 = vld [vmem:[%s315 + $0x108] sm:$0xff]
    %v350 = vld [vmem:[%s315 + $0x110] sm:$0xff]
    %v351 = vld [vmem:[%s315 + $0x118] sm:$0xff]
    %v352 = vld [vmem:[%s315 + $0x120] sm:$0xff]
    %v353 = vld [vmem:[%s315 + $0x128] sm:$0xff]
    %v354 = vld [vmem:[%s315 + $0x130] sm:$0xff]
    %v355 = vld [vmem:[%s315 + $0x138] sm:$0xff]
    %v356 = vld [vmem:[%s315 + $0x140] sm:$0xff]
    %v357 = vld [vmem:[%s315 + $0x148] sm:$0xff]
    %v358 = vld [vmem:[%s315 + $0x150] sm:$0xff]
    %v359 = vld [vmem:[%s315 + $0x158] sm:$0xff]
    %v360 = vld [vmem:[%s315 + $0x160] sm:$0xff]
    %v361 = vld [vmem:[%s315 + $0x168] sm:$0xff]
    %v362 = vld [vmem:[%s315 + $0x170] sm:$0xff]
    %v363 = vld [vmem:[%s315 + $0x178] sm:$0xff]
    %v364 = vld [vmem:[%s315 + $0x180] sm:$0xff]
    %v365 = vld [vmem:[%s315 + $0x188] sm:$0xff]
    %v366 = vld [vmem:[%s315 + $0x190] sm:$0xff]
    %v367 = vld [vmem:[%s315 + $0x198] sm:$0xff]
    %v368 = vld [vmem:[%s315 + $0x1a0] sm:$0xff]
    %v369 = vld [vmem:[%s315 + $0x1a8] sm:$0xff]
    %v370 = vld [vmem:[%s315 + $0x1b0] sm:$0xff]
    %v371 = vld [vmem:[%s315 + $0x1b8] sm:$0xff]
    %v372 = vld [vmem:[%s315 + $0x1c0] sm:$0xff]
    %v373 = vld [vmem:[%s315 + $0x1c8] sm:$0xff]
    %v374 = vld [vmem:[%s315 + $0x1d0] sm:$0xff]
    %v375 = vld [vmem:[%s315 + $0x1d8] sm:$0xff]
    %v376 = vld [vmem:[%s315 + $0x1e0] sm:$0xff]
    %v377 = vld [vmem:[%s315 + $0x1e8] sm:$0xff]
    %v378 = vld [vmem:[%s315 + $0x1f0] sm:$0xff]
    %v379 = vld [vmem:[%s315 + $0x1f8] sm:$0xff]
    %380 = vmatprep.subr.mxu0 %v317
    %381 = vmatpush1.msra.mxu0 %v316
    %382 = vmatprep.subr.mxu0 %v319
    %383 = vmatpush1.msra.mxu0 %v318
    %384 = vmatprep.subr.mxu0 %v321
    %385 = vmatpush1.msra.mxu0 %v320
    %386 = vmatprep.subr.mxu0 %v323
    %387 = vmatpush1.msra.mxu0 %v322
    %388 = vmatprep.subr.mxu0 %v325
    %389 = vmatpush1.msra.mxu0 %v324
    %390 = vmatprep.subr.mxu0 %v327
    %391 = vmatpush1.msra.mxu0 %v326
    %392 = vmatprep.subr.mxu0 %v329
    %393 = vmatpush1.msra.mxu0 %v328
    %394 = vmatprep.subr.mxu0 %v331
    %395 = vmatpush1.msra.mxu0 %v330
    %396 = vmatprep.subr.mxu0 %v333
    %397 = vmatpush1.msra.mxu0 %v332
    %398 = vmatprep.subr.mxu0 %v335
    %399 = vmatpush1.msra.mxu0 %v334
    %400 = vmatprep.subr.mxu0 %v337
    %401 = vmatpush1.msra.mxu0 %v336
    %402 = vmatprep.subr.mxu0 %v339
    %403 = vmatpush1.msra.mxu0 %v338
    %404 = vmatprep.subr.mxu0 %v341
    %405 = vmatpush1.msra.mxu0 %v340
    %406 = vmatprep.subr.mxu0 %v343
    %407 = vmatpush1.msra.mxu0 %v342
    %408 = vmatprep.subr.mxu0 %v345
    %409 = vmatpush1.msra.mxu0 %v344
    %410 = vmatprep.subr.mxu0 %v347
    %411 = vmatpush1.msra.mxu0 %v346
    %412 = vmatprep.subr.mxu0 %v349
    %413 = vmatpush1.msra.mxu0 %v348
    %414 = vmatprep.subr.mxu0 %v351
    %415 = vmatpush1.msra.mxu0 %v350
    %416 = vmatprep.subr.mxu0 %v353
    %417 = vmatpush1.msra.mxu0 %v352
    %418 = vmatprep.subr.mxu0 %v355
    %419 = vmatpush1.msra.mxu0 %v354
    %420 = vmatprep.subr.mxu0 %v357
    %421 = vmatpush1.msra.mxu0 %v356
    %422 = vmatprep.subr.mxu0 %v359
    %423 = vmatpush1.msra.mxu0 %v358
    %424 = vmatprep.subr.mxu0 %v361
    %425 = vmatpush1.msra.mxu0 %v360
    %426 = vmatprep.subr.mxu0 %v363
    %427 = vmatpush1.msra.mxu0 %v362
    %428 = vmatprep.subr.mxu0 %v365
    %429 = vmatpush1.msra.mxu0 %v364
    %430 = vmatprep.subr.mxu0 %v367
    %431 = vmatpush1.msra.mxu0 %v366
    %432 = vmatprep.subr.mxu0 %v369
    %433 = vmatpush1.msra.mxu0 %v368
    %434 = vmatprep.subr.mxu0 %v371
    %435 = vmatpush1.msra.mxu0 %v370
    %436 = vmatprep.subr.mxu0 %v373
    %437 = vmatpush1.msra.mxu0 %v372
    %438 = vmatprep.subr.mxu0 %v375
    %439 = vmatpush1.msra.mxu0 %v374
    %440 = vmatprep.subr.mxu0 %v377
    %441 = vmatpush1.msra.mxu0 %v376
    %442 = vmatprep.subr.mxu0 %v379
    %443 = vmatpush1.msra.mxu0 %v378
    %444 = vmatprep.mubr.f32.mxu0 %v103
    %445 = vmatmul.mubr.f32.gmra.mrb[0].mxu0 %v102
    %v446 = vpop.f32.mrb[0].mxu0
    %v447 = vadd.f32 0.0, %v446
    %v448 = vpop.f32.mrb[0].mxu0
    %v449 = vadd.f32 0.0, %v448
    %450 = vdwg.mxu0
    %v451 = vmax.f32 %v313, %v447
    %v452 = vmax.f32 %v314, %v449
    %s453 = scalar_lea.vmem %s1, 1536
    %v454 = vld [vmem:[%s453] sm:$0xff]
    %v455 = vld [vmem:[%s453 + $0x8] sm:$0xff]
    %v456 = vld [vmem:[%s453 + $0x10] sm:$0xff]
    %v457 = vld [vmem:[%s453 + $0x18] sm:$0xff]
    %v458 = vld [vmem:[%s453 + $0x20] sm:$0xff]
    %v459 = vld [vmem:[%s453 + $0x28] sm:$0xff]
    %v460 = vld [vmem:[%s453 + $0x30] sm:$0xff]
    %v461 = vld [vmem:[%s453 + $0x38] sm:$0xff]
    %v462 = vld [vmem:[%s453 + $0x40] sm:$0xff]
    %v463 = vld [vmem:[%s453 + $0x48] sm:$0xff]
    %v464 = vld [vmem:[%s453 + $0x50] sm:$0xff]
    %v465 = vld [vmem:[%s453 + $0x58] sm:$0xff]
    %v466 = vld [vmem:[%s453 + $0x60] sm:$0xff]
    %v467 = vld [vmem:[%s453 + $0x68] sm:$0xff]
    %v468 = vld [vmem:[%s453 + $0x70] sm:$0xff]
    %v469 = vld [vmem:[%s453 + $0x78] sm:$0xff]
    %v470 = vld [vmem:[%s453 + $0x80] sm:$0xff]
    %v471 = vld [vmem:[%s453 + $0x88] sm:$0xff]
    %v472 = vld [vmem:[%s453 + $0x90] sm:$0xff]
    %v473 = vld [vmem:[%s453 + $0x98] sm:$0xff]
    %v474 = vld [vmem:[%s453 + $0xa0] sm:$0xff]
    %v475 = vld [vmem:[%s453 + $0xa8] sm:$0xff]
    %v476 = vld [vmem:[%s453 + $0xb0] sm:$0xff]
    %v477 = vld [vmem:[%s453 + $0xb8] sm:$0xff]
    %v478 = vld [vmem:[%s453 + $0xc0] sm:$0xff]
    %v479 = vld [vmem:[%s453 + $0xc8] sm:$0xff]
    %v480 = vld [vmem:[%s453 + $0xd0] sm:$0xff]
    %v481 = vld [vmem:[%s453 + $0xd8] sm:$0xff]
    %v482 = vld [vmem:[%s453 + $0xe0] sm:$0xff]
    %v483 = vld [vmem:[%s453 + $0xe8] sm:$0xff]
    %v484 = vld [vmem:[%s453 + $0xf0] sm:$0xff]
    %v485 = vld [vmem:[%s453 + $0xf8] sm:$0xff]
    %v486 = vld [vmem:[%s453 + $0x100] sm:$0xff]
    %v487 = vld [vmem:[%s453 + $0x108] sm:$0xff]
    %v488 = vld [vmem:[%s453 + $0x110] sm:$0xff]
    %v489 = vld [vmem:[%s453 + $0x118] sm:$0xff]
    %v490 = vld [vmem:[%s453 + $0x120] sm:$0xff]
    %v491 = vld [vmem:[%s453 + $0x128] sm:$0xff]
    %v492 = vld [vmem:[%s453 + $0x130] sm:$0xff]
    %v493 = vld [vmem:[%s453 + $0x138] sm:$0xff]
    %v494 = vld [vmem:[%s453 + $0x140] sm:$0xff]
    %v495 = vld [vmem:[%s453 + $0x148] sm:$0xff]
    %v496 = vld [vmem:[%s453 + $0x150] sm:$0xff]
    %v497 = vld [vmem:[%s453 + $0x158] sm:$0xff]
    %v498 = vld [vmem:[%s453 + $0x160] sm:$0xff]
    %v499 = vld [vmem:[%s453 + $0x168] sm:$0xff]
    %v500 = vld [vmem:[%s453 + $0x170] sm:$0xff]
    %v501 = vld [vmem:[%s453 + $0x178] sm:$0xff]
    %v502 = vld [vmem:[%s453 + $0x180] sm:$0xff]
    %v503 = vld [vmem:[%s453 + $0x188] sm:$0xff]
    %v504 = vld [vmem:[%s453 + $0x190] sm:$0xff]
    %v505 = vld [vmem:[%s453 + $0x198] sm:$0xff]
    %v506 = vld [vmem:[%s453 + $0x1a0] sm:$0xff]
    %v507 = vld [vmem:[%s453 + $0x1a8] sm:$0xff]
    %v508 = vld [vmem:[%s453 + $0x1b0] sm:$0xff]
    %v509 = vld [vmem:[%s453 + $0x1b8] sm:$0xff]
    %v510 = vld [vmem:[%s453 + $0x1c0] sm:$0xff]
    %v511 = vld [vmem:[%s453 + $0x1c8] sm:$0xff]
    %v512 = vld [vmem:[%s453 + $0x1d0] sm:$0xff]
    %v513 = vld [vmem:[%s453 + $0x1d8] sm:$0xff]
    %v514 = vld [vmem:[%s453 + $0x1e0] sm:$0xff]
    %v515 = vld [vmem:[%s453 + $0x1e8] sm:$0xff]
    %v516 = vld [vmem:[%s453 + $0x1f0] sm:$0xff]
    %v517 = vld [vmem:[%s453 + $0x1f8] sm:$0xff]
    %518 = vmatprep.subr.mxu0 %v455
    %519 = vmatpush1.msra.mxu0 %v454
    %520 = vmatprep.subr.mxu0 %v457
    %521 = vmatpush1.msra.mxu0 %v456
    %522 = vmatprep.subr.mxu0 %v459
    %523 = vmatpush1.msra.mxu0 %v458
    %524 = vmatprep.subr.mxu0 %v461
    %525 = vmatpush1.msra.mxu0 %v460
    %526 = vmatprep.subr.mxu0 %v463
    %527 = vmatpush1.msra.mxu0 %v462
    %528 = vmatprep.subr.mxu0 %v465
    %529 = vmatpush1.msra.mxu0 %v464
    %530 = vmatprep.subr.mxu0 %v467
    %531 = vmatpush1.msra.mxu0 %v466
    %532 = vmatprep.subr.mxu0 %v469
    %533 = vmatpush1.msra.mxu0 %v468
    %534 = vmatprep.subr.mxu0 %v471
    %535 = vmatpush1.msra.mxu0 %v470
    %536 = vmatprep.subr.mxu0 %v473
    %537 = vmatpush1.msra.mxu0 %v472
    %538 = vmatprep.subr.mxu0 %v475
    %539 = vmatpush1.msra.mxu0 %v474
    %540 = vmatprep.subr.mxu0 %v477
    %541 = vmatpush1.msra.mxu0 %v476
    %542 = vmatprep.subr.mxu0 %v479
    %543 = vmatpush1.msra.mxu0 %v478
    %544 = vmatprep.subr.mxu0 %v481
    %545 = vmatpush1.msra.mxu0 %v480
    %546 = vmatprep.subr.mxu0 %v483
    %547 = vmatpush1.msra.mxu0 %v482
    %548 = vmatprep.subr.mxu0 %v485
    %549 = vmatpush1.msra.mxu0 %v484
    %550 = vmatprep.subr.mxu0 %v487
    %551 = vmatpush1.msra.mxu0 %v486
    %552 = vmatprep.subr.mxu0 %v489
    %553 = vmatpush1.msra.mxu0 %v488
    %554 = vmatprep.subr.mxu0 %v491
    %555 = vmatpush1.msra.mxu0 %v490
    %556 = vmatprep.subr.mxu0 %v493
    %557 = vmatpush1.msra.mxu0 %v492
    %558 = vmatprep.subr.mxu0 %v495
    %559 = vmatpush1.msra.mxu0 %v494
    %560 = vmatprep.subr.mxu0 %v497
    %561 = vmatpush1.msra.mxu0 %v496
    %562 = vmatprep.subr.mxu0 %v499
    %563 = vmatpush1.msra.mxu0 %v498
    %564 = vmatprep.subr.mxu0 %v501
    %565 = vmatpush1.msra.mxu0 %v500
    %566 = vmatprep.subr.mxu0 %v503
    %567 = vmatpush1.msra.mxu0 %v502
    %568 = vmatprep.subr.mxu0 %v505
    %569 = vmatpush1.msra.mxu0 %v504
    %570 = vmatprep.subr.mxu0 %v507
    %571 = vmatpush1.msra.mxu0 %v506
    %572 = vmatprep.subr.mxu0 %v509
    %573 = vmatpush1.msra.mxu0 %v508
    %574 = vmatprep.subr.mxu0 %v511
    %575 = vmatpush1.msra.mxu0 %v510
    %576 = vmatprep.subr.mxu0 %v513
    %577 = vmatpush1.msra.mxu0 %v512
    %578 = vmatprep.subr.mxu0 %v515
    %579 = vmatpush1.msra.mxu0 %v514
    %580 = vmatprep.subr.mxu0 %v517
    %581 = vmatpush1.msra.mxu0 %v516
    %582 = vmatprep.mubr.f32.mxu0 %v103
    %583 = vmatmul.mubr.f32.gmra.mrb[0].mxu0 %v102
    %v584 = vpop.f32.mrb[0].mxu0
    %v585 = vadd.f32 0.0, %v584
    %v586 = vpop.f32.mrb[0].mxu0
    %v587 = vadd.f32 0.0, %v586
    %588 = vdwg.mxu0
    %v589 = vmax.f32 %v451, %v585
    %v590 = vmax.f32 %v452, %v587
    %v591 = vld [vmem:[%s2] sm:$0x3]
    %v593 = vlaneseq
    %v594 = vshrl.u32 %v593, 7
    %v595 = vsub.s32 0, %v594
    %v596 = vrot.slane %v591, %v595
    %v597 = vlaneseq
    %v598 = vshrl.u32 %v597, 7
    %v599 = vsub.s32 1, %v598
    %v600 = vrot.slane %v591, %v599
    %v603 = vmul.f32 %v589, %v596
    %v604 = vmul.f32 %v590, %v600
    %v605 = vld [vmem:[%s3] sm:$0x3]
    %v607 = vlaneseq
    %v608 = vshrl.u32 %v607, 7
    %v609 = vsub.s32 0, %v608
    %v610 = vrot.slane %v605, %v609
    %v611 = vlaneseq
    %v612 = vshrl.u32 %v611, 7
    %v613 = vsub.s32 1, %v612
    %v614 = vrot.slane %v605, %v613
    %v617 = vadd.f32 %v603, %v610
    %v618 = vadd.f32 %v604, %v614
    %v621 = vcombine.low %v617, %v618
    %v623 = vunpack.c.l.s4 1966171168
    %v624 = vunpack.c.0.s8 %v623
    %v625 = vlaneseq
    %v626 = vshrl.u32 %v625, 7
    %v627 = vsub.s32 %v624, %v626
    %v628 = vrot.slane %v621, %v627
    %v629 = vcombine.high %v628, %v628
    %v631 = vunpack.c.l.s4 1966171168
    %v632 = vunpack.c.0.s8 %v631
    %v633 = vlaneseq
    %v634 = vshrl.u32 %v633, 7
    %v635 = vsub.s32 %v632, %v634
    %v636 = vrot.slane %v628, %v635
    %v638 = vunpack.c.l.s4 1966171168
    %v639 = vunpack.c.0.s8 %v638
    %v640 = vlaneseq
    %v641 = vshrl.u32 %v640, 7
    %v642 = vsub.s32 %v639, %v641
    %v643 = vrot.slane %v629, %v642
    %v644 = vlaneseq
    %v645 = vshrl.u32 %v644, 7
    %v646 = vsub.s32 0, %v645
    %v647 = vrot.slane %v617, %v646
    %649 = vbcast.lane.b32.xlu0 %v647, 256
    %v650 = vpop.permute.xlu0 %649
    %s652 = sor.u32 256, 8
    %653 = vbcast.lane.b32.xlu0 %v647, %s652
    %v654 = vpop.permute.xlu0 %653
    %s656 = sor.u32 256, 16
    %657 = vbcast.lane.b32.xlu0 %v647, %s656
    %v658 = vpop.permute.xlu0 %657
    %s660 = sor.u32 256, 24
    %661 = vbcast.lane.b32.xlu0 %v647, %s660
    %v662 = vpop.permute.xlu0 %661
    %s664 = sor.u32 256, 32
    %665 = vbcast.lane.b32.xlu0 %v647, %s664
    %v666 = vpop.permute.xlu0 %665
    %s668 = sor.u32 256, 40
    %669 = vbcast.lane.b32.xlu0 %v647, %s668
    %v670 = vpop.permute.xlu0 %669
    %s672 = sor.u32 256, 48
    %673 = vbcast.lane.b32.xlu0 %v647, %s672
    %v674 = vpop.permute.xlu0 %673
    %s676 = sor.u32 256, 56
    %677 = vbcast.lane.b32.xlu0 %v647, %s676
    %v678 = vpop.permute.xlu0 %677
    %s680 = sor.u32 256, 64
    %681 = vbcast.lane.b32.xlu0 %v647, %s680
    %v682 = vpop.permute.xlu0 %681
    %s684 = sor.u32 256, 72
    %685 = vbcast.lane.b32.xlu0 %v647, %s684
    %v686 = vpop.permute.xlu0 %685
    %s688 = sor.u32 256, 80
    %689 = vbcast.lane.b32.xlu0 %v647, %s688
    %v690 = vpop.permute.xlu0 %689
    %s692 = sor.u32 256, 88
    %693 = vbcast.lane.b32.xlu0 %v647, %s692
    %v694 = vpop.permute.xlu0 %693
    %s696 = sor.u32 256, 96
    %697 = vbcast.lane.b32.xlu0 %v647, %s696
    %v698 = vpop.permute.xlu0 %697
    %s700 = sor.u32 256, 104
    %701 = vbcast.lane.b32.xlu0 %v647, %s700
    %v702 = vpop.permute.xlu0 %701
    %s704 = sor.u32 256, 112
    %705 = vbcast.lane.b32.xlu0 %v647, %s704
    %v706 = vpop.permute.xlu0 %705
    %s708 = sor.u32 256, 120
    %709 = vbcast.lane.b32.xlu0 %v647, %s708
    %v710 = vpop.permute.xlu0 %709
    %v711 = vlaneseq
    %v712 = vshrl.u32 %v711, 7
    %v713 = vsub.s32 0, %v712
    %v714 = vrot.slane %v618, %v713
    %716 = vbcast.lane.b32.xlu0 %v714, 256
    %v717 = vpop.permute.xlu0 %716
    %s719 = sor.u32 256, 8
    %720 = vbcast.lane.b32.xlu0 %v714, %s719
    %v721 = vpop.permute.xlu0 %720
    %v722 = vlaneseq
    %v723 = vshrl.u32 %v722, 7
    %v724 = vsub.s32 1, %v723
    %v725 = vrot.slane %v617, %v724
    %727 = vbcast.lane.b32.xlu0 %v725, 256
    %v728 = vpop.permute.xlu0 %727
    %s730 = sor.u32 256, 8
    %731 = vbcast.lane.b32.xlu0 %v725, %s730
    %v732 = vpop.permute.xlu0 %731
    %s734 = sor.u32 256, 16
    %735 = vbcast.lane.b32.xlu0 %v725, %s734
    %v736 = vpop.permute.xlu0 %735
    %s738 = sor.u32 256, 24
    %739 = vbcast.lane.b32.xlu0 %v725, %s738
    %v740 = vpop.permute.xlu0 %739
    %s742 = sor.u32 256, 32
    %743 = vbcast.lane.b32.xlu0 %v725, %s742
    %v744 = vpop.permute.xlu0 %743
    %s746 = sor.u32 256, 40
    %747 = vbcast.lane.b32.xlu0 %v725, %s746
    %v748 = vpop.permute.xlu0 %747
    %s750 = sor.u32 256, 48
    %751 = vbcast.lane.b32.xlu0 %v725, %s750
    %v752 = vpop.permute.xlu0 %751
    %s754 = sor.u32 256, 56
    %755 = vbcast.lane.b32.xlu0 %v725, %s754
    %v756 = vpop.permute.xlu0 %755
    %s758 = sor.u32 256, 64
    %759 = vbcast.lane.b32.xlu0 %v725, %s758
    %v760 = vpop.permute.xlu0 %759
    %s762 = sor.u32 256, 72
    %763 = vbcast.lane.b32.xlu0 %v725, %s762
    %v764 = vpop.permute.xlu0 %763
    %s766 = sor.u32 256, 80
    %767 = vbcast.lane.b32.xlu0 %v725, %s766
    %v768 = vpop.permute.xlu0 %767
    %s770 = sor.u32 256, 88
    %771 = vbcast.lane.b32.xlu0 %v725, %s770
    %v772 = vpop.permute.xlu0 %771
    %s774 = sor.u32 256, 96
    %775 = vbcast.lane.b32.xlu0 %v725, %s774
    %v776 = vpop.permute.xlu0 %775
    %s778 = sor.u32 256, 104
    %779 = vbcast.lane.b32.xlu0 %v725, %s778
    %v780 = vpop.permute.xlu0 %779
    %s782 = sor.u32 256, 112
    %783 = vbcast.lane.b32.xlu0 %v725, %s782
    %v784 = vpop.permute.xlu0 %783
    %s786 = sor.u32 256, 120
    %787 = vbcast.lane.b32.xlu0 %v725, %s786
    %v788 = vpop.permute.xlu0 %787
    %v789 = vlaneseq
    %v790 = vshrl.u32 %v789, 7
    %v791 = vsub.s32 1, %v790
    %v792 = vrot.slane %v618, %v791
    %794 = vbcast.lane.b32.xlu0 %v792, 256
    %v795 = vpop.permute.xlu0 %794
    %s797 = sor.u32 256, 8
    %798 = vbcast.lane.b32.xlu0 %v792, %s797
    %v799 = vpop.permute.xlu0 %798
    %v800 = vlaneseq
    %v801 = vshrl.u32 %v800, 7
    %v802 = vsub.s32 0, %v801
    %v803 = vrot.slane %v636, %v802
    %v804 = vlaneseq
    %v805 = vshrl.u32 %v804, 7
    %v806 = vsub.s32 1, %v805
    %v807 = vrot.slane %v636, %v806
    %v808 = vlaneseq
    %v809 = vshrl.u32 %v808, 7
    %v810 = vsub.s32 0, %v809
    %v811 = vrot.slane %v643, %v810
    %v812 = vlaneseq
    %v813 = vshrl.u32 %v812, 7
    %v814 = vsub.s32 1, %v813
    %v815 = vrot.slane %v643, %v814
    %vm820 = vcmp.gt.f32.partialorder %v803, %v650
    %vm821 = vcmp.gt.f32.partialorder %v807, %v650
    %vm822 = vcmp.gt.f32.partialorder %v803, %v654
    %vm823 = vcmp.gt.f32.partialorder %v807, %v654
    %vm824 = vcmp.gt.f32.partialorder %v803, %v658
    %vm825 = vcmp.gt.f32.partialorder %v807, %v658
    %vm826 = vcmp.gt.f32.partialorder %v803, %v662
    %vm827 = vcmp.gt.f32.partialorder %v807, %v662
    %vm828 = vcmp.gt.f32.partialorder %v803, %v666
    %vm829 = vcmp.gt.f32.partialorder %v807, %v666
    %vm830 = vcmp.gt.f32.partialorder %v803, %v670
    %vm831 = vcmp.gt.f32.partialorder %v807, %v670
    %vm832 = vcmp.gt.f32.partialorder %v803, %v674
    %vm833 = vcmp.gt.f32.partialorder %v807, %v674
    %vm834 = vcmp.gt.f32.partialorder %v803, %v678
    %vm835 = vcmp.gt.f32.partialorder %v807, %v678
    %vm836 = vcmp.gt.f32.partialorder %v803, %v682
    %vm837 = vcmp.gt.f32.partialorder %v807, %v682
    %vm838 = vcmp.gt.f32.partialorder %v803, %v686
    %vm839 = vcmp.gt.f32.partialorder %v807, %v686
    %vm840 = vcmp.gt.f32.partialorder %v803, %v690
    %vm841 = vcmp.gt.f32.partialorder %v807, %v690
    %vm842 = vcmp.gt.f32.partialorder %v803, %v694
    %vm843 = vcmp.gt.f32.partialorder %v807, %v694
    %vm844 = vcmp.gt.f32.partialorder %v803, %v698
    %vm845 = vcmp.gt.f32.partialorder %v807, %v698
    %vm846 = vcmp.gt.f32.partialorder %v803, %v702
    %vm847 = vcmp.gt.f32.partialorder %v807, %v702
    %vm848 = vcmp.gt.f32.partialorder %v803, %v706
    %vm849 = vcmp.gt.f32.partialorder %v807, %v706
    %vm850 = vcmp.gt.f32.partialorder %v803, %v710
    %vm851 = vcmp.gt.f32.partialorder %v807, %v710
    %vm852 = vcmp.gt.f32.partialorder %v803, %v717
    %vm853 = vcmp.gt.f32.partialorder %v807, %v717
    %vm854 = vcmp.gt.f32.partialorder %v803, %v721
    %vm855 = vcmp.gt.f32.partialorder %v807, %v721
    %vm856 = vcmp.gt.f32.partialorder %v811, %v728
    %vm857 = vcmp.gt.f32.partialorder %v815, %v728
    %vm858 = vcmp.gt.f32.partialorder %v811, %v732
    %vm859 = vcmp.gt.f32.partialorder %v815, %v732
    %vm860 = vcmp.gt.f32.partialorder %v811, %v736
    %vm861 = vcmp.gt.f32.partialorder %v815, %v736
    %vm862 = vcmp.gt.f32.partialorder %v811, %v740
    %vm863 = vcmp.gt.f32.partialorder %v815, %v740
    %vm864 = vcmp.gt.f32.partialorder %v811, %v744
    %vm865 = vcmp.gt.f32.partialorder %v815, %v744
    %vm866 = vcmp.gt.f32.partialorder %v811, %v748
    %vm867 = vcmp.gt.f32.partialorder %v815, %v748
    %vm868 = vcmp.gt.f32.partialorder %v811, %v752
    %vm869 = vcmp.gt.f32.partialorder %v815, %v752
    %vm870 = vcmp.gt.f32.partialorder %v811, %v756
    %vm871 = vcmp.gt.f32.partialorder %v815, %v756
    %vm872 = vcmp.gt.f32.partialorder %v811, %v760
    %vm873 = vcmp.gt.f32.partialorder %v815, %v760
    %vm874 = vcmp.gt.f32.partialorder %v811, %v764
    %vm875 = vcmp.gt.f32.partialorder %v815, %v764
    %vm876 = vcmp.gt.f32.partialorder %v811, %v768
    %vm877 = vcmp.gt.f32.partialorder %v815, %v768
    %vm878 = vcmp.gt.f32.partialorder %v811, %v772
    %vm879 = vcmp.gt.f32.partialorder %v815, %v772
    %vm880 = vcmp.gt.f32.partialorder %v811, %v776
    %vm881 = vcmp.gt.f32.partialorder %v815, %v776
    %vm882 = vcmp.gt.f32.partialorder %v811, %v780
    %vm883 = vcmp.gt.f32.partialorder %v815, %v780
    %vm884 = vcmp.gt.f32.partialorder %v811, %v784
    %vm885 = vcmp.gt.f32.partialorder %v815, %v784
    %vm886 = vcmp.gt.f32.partialorder %v811, %v788
    %vm887 = vcmp.gt.f32.partialorder %v815, %v788
    %vm888 = vcmp.gt.f32.partialorder %v811, %v795
    %vm889 = vcmp.gt.f32.partialorder %v815, %v795
    %vm890 = vcmp.gt.f32.partialorder %v811, %v799
    %vm891 = vcmp.gt.f32.partialorder %v815, %v799
    %v892 = vsel %vm820, 1.0, 0.0
    %v893 = vsel %vm821, 1.0, 0.0
    %v894 = vsel %vm822, 1.0, 0.0
    %v895 = vsel %vm823, 1.0, 0.0
    %v896 = vsel %vm824, 1.0, 0.0
    %v897 = vsel %vm825, 1.0, 0.0
    %v898 = vsel %vm826, 1.0, 0.0
    %v899 = vsel %vm827, 1.0, 0.0
    %v900 = vsel %vm828, 1.0, 0.0
    %v901 = vsel %vm829, 1.0, 0.0
    %v902 = vsel %vm830, 1.0, 0.0
    %v903 = vsel %vm831, 1.0, 0.0
    %v904 = vsel %vm832, 1.0, 0.0
    %v905 = vsel %vm833, 1.0, 0.0
    %v906 = vsel %vm834, 1.0, 0.0
    %v907 = vsel %vm835, 1.0, 0.0
    %v908 = vsel %vm836, 1.0, 0.0
    %v909 = vsel %vm837, 1.0, 0.0
    %v910 = vsel %vm838, 1.0, 0.0
    %v911 = vsel %vm839, 1.0, 0.0
    %v912 = vsel %vm840, 1.0, 0.0
    %v913 = vsel %vm841, 1.0, 0.0
    %v914 = vsel %vm842, 1.0, 0.0
    %v915 = vsel %vm843, 1.0, 0.0
    %v916 = vsel %vm844, 1.0, 0.0
    %v917 = vsel %vm845, 1.0, 0.0
    %v918 = vsel %vm846, 1.0, 0.0
    %v919 = vsel %vm847, 1.0, 0.0
    %v920 = vsel %vm848, 1.0, 0.0
    %v921 = vsel %vm849, 1.0, 0.0
    %v922 = vsel %vm850, 1.0, 0.0
    %v923 = vsel %vm851, 1.0, 0.0
    %v924 = vsel %vm852, 1.0, 0.0
    %v925 = vsel %vm853, 1.0, 0.0
    %v926 = vsel %vm854, 1.0, 0.0
    %v927 = vsel %vm855, 1.0, 0.0
    %v928 = vsel %vm856, 1.0, 0.0
    %v929 = vsel %vm857, 1.0, 0.0
    %v930 = vsel %vm858, 1.0, 0.0
    %v931 = vsel %vm859, 1.0, 0.0
    %v932 = vsel %vm860, 1.0, 0.0
    %v933 = vsel %vm861, 1.0, 0.0
    %v934 = vsel %vm862, 1.0, 0.0
    %v935 = vsel %vm863, 1.0, 0.0
    %v936 = vsel %vm864, 1.0, 0.0
    %v937 = vsel %vm865, 1.0, 0.0
    %v938 = vsel %vm866, 1.0, 0.0
    %v939 = vsel %vm867, 1.0, 0.0
    %v940 = vsel %vm868, 1.0, 0.0
    %v941 = vsel %vm869, 1.0, 0.0
    %v942 = vsel %vm870, 1.0, 0.0
    %v943 = vsel %vm871, 1.0, 0.0
    %v944 = vsel %vm872, 1.0, 0.0
    %v945 = vsel %vm873, 1.0, 0.0
    %v946 = vsel %vm874, 1.0, 0.0
    %v947 = vsel %vm875, 1.0, 0.0
    %v948 = vsel %vm876, 1.0, 0.0
    %v949 = vsel %vm877, 1.0, 0.0
    %v950 = vsel %vm878, 1.0, 0.0
    %v951 = vsel %vm879, 1.0, 0.0
    %v952 = vsel %vm880, 1.0, 0.0
    %v953 = vsel %vm881, 1.0, 0.0
    %v954 = vsel %vm882, 1.0, 0.0
    %v955 = vsel %vm883, 1.0, 0.0
    %v956 = vsel %vm884, 1.0, 0.0
    %v957 = vsel %vm885, 1.0, 0.0
    %v958 = vsel %vm886, 1.0, 0.0
    %v959 = vsel %vm887, 1.0, 0.0
    %v960 = vsel %vm888, 1.0, 0.0
    %v961 = vsel %vm889, 1.0, 0.0
    %v962 = vsel %vm890, 1.0, 0.0
    %v963 = vsel %vm891, 1.0, 0.0
    %vm964 = vcmask 130048
    %v965 = vsel %vm964, %v893, 0.0
    %v966 = vadd.f32 %v892, %v965
    %967 = vadd.xlane.f32.xlu0 %v966
    %v968 = vpop.xlane.xlu0 %967
    %v969 = vsel %vm964, %v895, 0.0
    %v970 = vadd.f32 %v894, %v969
    %971 = vadd.xlane.f32.xlu0 %v970
    %v972 = vpop.xlane.xlu0 %971
    %v973 = vsel %vm964, %v897, 0.0
    %v974 = vadd.f32 %v896, %v973
    %975 = vadd.xlane.f32.xlu0 %v974
    %v976 = vpop.xlane.xlu0 %975
    %v977 = vsel %vm964, %v899, 0.0
    %v978 = vadd.f32 %v898, %v977
    %979 = vadd.xlane.f32.xlu0 %v978
    %v980 = vpop.xlane.xlu0 %979
    %v981 = vsel %vm964, %v901, 0.0
    %v982 = vadd.f32 %v900, %v981
    %983 = vadd.xlane.f32.xlu0 %v982
    %v984 = vpop.xlane.xlu0 %983
    %v985 = vsel %vm964, %v903, 0.0
    %v986 = vadd.f32 %v902, %v985
    %987 = vadd.xlane.f32.xlu0 %v986
    %v988 = vpop.xlane.xlu0 %987
    %v989 = vsel %vm964, %v905, 0.0
    %v990 = vadd.f32 %v904, %v989
    %991 = vadd.xlane.f32.xlu0 %v990
    %v992 = vpop.xlane.xlu0 %991
    %v993 = vsel %vm964, %v907, 0.0
    %v994 = vadd.f32 %v906, %v993
    %995 = vadd.xlane.f32.xlu0 %v994
    %v996 = vpop.xlane.xlu0 %995
    %v997 = vsel %vm964, %v909, 0.0
    %v998 = vadd.f32 %v908, %v997
    %999 = vadd.xlane.f32.xlu0 %v998
    %v1000 = vpop.xlane.xlu0 %999
    %v1001 = vsel %vm964, %v911, 0.0
    %v1002 = vadd.f32 %v910, %v1001
    %1003 = vadd.xlane.f32.xlu0 %v1002
    %v1004 = vpop.xlane.xlu0 %1003
    %v1005 = vsel %vm964, %v913, 0.0
    %v1006 = vadd.f32 %v912, %v1005
    %1007 = vadd.xlane.f32.xlu0 %v1006
    %v1008 = vpop.xlane.xlu0 %1007
    %v1009 = vsel %vm964, %v915, 0.0
    %v1010 = vadd.f32 %v914, %v1009
    %1011 = vadd.xlane.f32.xlu0 %v1010
    %v1012 = vpop.xlane.xlu0 %1011
    %v1013 = vsel %vm964, %v917, 0.0
    %v1014 = vadd.f32 %v916, %v1013
    %1015 = vadd.xlane.f32.xlu0 %v1014
    %v1016 = vpop.xlane.xlu0 %1015
    %v1017 = vsel %vm964, %v919, 0.0
    %v1018 = vadd.f32 %v918, %v1017
    %1019 = vadd.xlane.f32.xlu0 %v1018
    %v1020 = vpop.xlane.xlu0 %1019
    %v1021 = vsel %vm964, %v921, 0.0
    %v1022 = vadd.f32 %v920, %v1021
    %1023 = vadd.xlane.f32.xlu0 %v1022
    %v1024 = vpop.xlane.xlu0 %1023
    %v1025 = vsel %vm964, %v923, 0.0
    %v1026 = vadd.f32 %v922, %v1025
    %1027 = vadd.xlane.f32.xlu0 %v1026
    %v1028 = vpop.xlane.xlu0 %1027
    %v1029 = vsel %vm964, %v925, 0.0
    %v1030 = vadd.f32 %v924, %v1029
    %1031 = vadd.xlane.f32.xlu0 %v1030
    %v1032 = vpop.xlane.xlu0 %1031
    %v1033 = vsel %vm964, %v927, 0.0
    %v1034 = vadd.f32 %v926, %v1033
    %1035 = vadd.xlane.f32.xlu0 %v1034
    %v1036 = vpop.xlane.xlu0 %1035
    %v1037 = vsel %vm964, %v929, 0.0
    %v1038 = vadd.f32 %v928, %v1037
    %1039 = vadd.xlane.f32.xlu0 %v1038
    %v1040 = vpop.xlane.xlu0 %1039
    %v1041 = vsel %vm964, %v931, 0.0
    %v1042 = vadd.f32 %v930, %v1041
    %1043 = vadd.xlane.f32.xlu0 %v1042
    %v1044 = vpop.xlane.xlu0 %1043
    %v1045 = vsel %vm964, %v933, 0.0
    %v1046 = vadd.f32 %v932, %v1045
    %1047 = vadd.xlane.f32.xlu0 %v1046
    %v1048 = vpop.xlane.xlu0 %1047
    %v1049 = vsel %vm964, %v935, 0.0
    %v1050 = vadd.f32 %v934, %v1049
    %1051 = vadd.xlane.f32.xlu0 %v1050
    %v1052 = vpop.xlane.xlu0 %1051
    %v1053 = vsel %vm964, %v937, 0.0
    %v1054 = vadd.f32 %v936, %v1053
    %1055 = vadd.xlane.f32.xlu0 %v1054
    %v1056 = vpop.xlane.xlu0 %1055
    %v1057 = vsel %vm964, %v939, 0.0
    %v1058 = vadd.f32 %v938, %v1057
    %1059 = vadd.xlane.f32.xlu0 %v1058
    %v1060 = vpop.xlane.xlu0 %1059
    %v1061 = vsel %vm964, %v941, 0.0
    %v1062 = vadd.f32 %v940, %v1061
    %1063 = vadd.xlane.f32.xlu0 %v1062
    %v1064 = vpop.xlane.xlu0 %1063
    %v1065 = vsel %vm964, %v943, 0.0
    %v1066 = vadd.f32 %v942, %v1065
    %1067 = vadd.xlane.f32.xlu0 %v1066
    %v1068 = vpop.xlane.xlu0 %1067
    %v1069 = vsel %vm964, %v945, 0.0
    %v1070 = vadd.f32 %v944, %v1069
    %1071 = vadd.xlane.f32.xlu0 %v1070
    %v1072 = vpop.xlane.xlu0 %1071
    %v1073 = vsel %vm964, %v947, 0.0
    %v1074 = vadd.f32 %v946, %v1073
    %1075 = vadd.xlane.f32.xlu0 %v1074
    %v1076 = vpop.xlane.xlu0 %1075
    %v1077 = vsel %vm964, %v949, 0.0
    %v1078 = vadd.f32 %v948, %v1077
    %1079 = vadd.xlane.f32.xlu0 %v1078
    %v1080 = vpop.xlane.xlu0 %1079
    %v1081 = vsel %vm964, %v951, 0.0
    %v1082 = vadd.f32 %v950, %v1081
    %1083 = vadd.xlane.f32.xlu0 %v1082
    %v1084 = vpop.xlane.xlu0 %1083
    %v1085 = vsel %vm964, %v953, 0.0
    %v1086 = vadd.f32 %v952, %v1085
    %1087 = vadd.xlane.f32.xlu0 %v1086
    %v1088 = vpop.xlane.xlu0 %1087
    %v1089 = vsel %vm964, %v955, 0.0
    %v1090 = vadd.f32 %v954, %v1089
    %1091 = vadd.xlane.f32.xlu0 %v1090
    %v1092 = vpop.xlane.xlu0 %1091
    %v1093 = vsel %vm964, %v957, 0.0
    %v1094 = vadd.f32 %v956, %v1093
    %1095 = vadd.xlane.f32.xlu0 %v1094
    %v1096 = vpop.xlane.xlu0 %1095
    %v1097 = vsel %vm964, %v959, 0.0
    %v1098 = vadd.f32 %v958, %v1097
    %1099 = vadd.xlane.f32.xlu0 %v1098
    %v1100 = vpop.xlane.xlu0 %1099
    %v1101 = vsel %vm964, %v961, 0.0
    %v1102 = vadd.f32 %v960, %v1101
    %1103 = vadd.xlane.f32.xlu0 %v1102
    %v1104 = vpop.xlane.xlu0 %1103
    %v1105 = vsel %vm964, %v963, 0.0
    %v1106 = vadd.f32 %v962, %v1105
    %1107 = vadd.xlane.f32.xlu0 %v1106
    %v1108 = vpop.xlane.xlu0 %1107
    %vm1109 = vcmp.lt.f32.partialorder %v968, 10.0
    %vm1110 = vcmp.lt.f32.partialorder %v972, 10.0
    %vm1111 = vcmp.lt.f32.partialorder %v976, 10.0
    %vm1112 = vcmp.lt.f32.partialorder %v980, 10.0
    %vm1113 = vcmp.lt.f32.partialorder %v984, 10.0
    %vm1114 = vcmp.lt.f32.partialorder %v988, 10.0
    %vm1115 = vcmp.lt.f32.partialorder %v992, 10.0
    %vm1116 = vcmp.lt.f32.partialorder %v996, 10.0
    %vm1117 = vcmp.lt.f32.partialorder %v1000, 10.0
    %vm1118 = vcmp.lt.f32.partialorder %v1004, 10.0
    %vm1119 = vcmp.lt.f32.partialorder %v1008, 10.0
    %vm1120 = vcmp.lt.f32.partialorder %v1012, 10.0
    %vm1121 = vcmp.lt.f32.partialorder %v1016, 10.0
    %vm1122 = vcmp.lt.f32.partialorder %v1020, 10.0
    %vm1123 = vcmp.lt.f32.partialorder %v1024, 10.0
    %vm1124 = vcmp.lt.f32.partialorder %v1028, 10.0
    %vm1125 = vcmp.lt.f32.partialorder %v1032, 10.0
    %vm1126 = vcmp.lt.f32.partialorder %v1036, 10.0
    %vm1127 = vcmp.lt.f32.partialorder %v1040, 10.0
    %vm1128 = vcmp.lt.f32.partialorder %v1044, 10.0
    %vm1129 = vcmp.lt.f32.partialorder %v1048, 10.0
    %vm1130 = vcmp.lt.f32.partialorder %v1052, 10.0
    %vm1131 = vcmp.lt.f32.partialorder %v1056, 10.0
    %vm1132 = vcmp.lt.f32.partialorder %v1060, 10.0
    %vm1133 = vcmp.lt.f32.partialorder %v1064, 10.0
    %vm1134 = vcmp.lt.f32.partialorder %v1068, 10.0
    %vm1135 = vcmp.lt.f32.partialorder %v1072, 10.0
    %vm1136 = vcmp.lt.f32.partialorder %v1076, 10.0
    %vm1137 = vcmp.lt.f32.partialorder %v1080, 10.0
    %vm1138 = vcmp.lt.f32.partialorder %v1084, 10.0
    %vm1139 = vcmp.lt.f32.partialorder %v1088, 10.0
    %vm1140 = vcmp.lt.f32.partialorder %v1092, 10.0
    %vm1141 = vcmp.lt.f32.partialorder %v1096, 10.0
    %vm1142 = vcmp.lt.f32.partialorder %v1100, 10.0
    %vm1143 = vcmp.lt.f32.partialorder %v1104, 10.0
    %vm1144 = vcmp.lt.f32.partialorder %v1108, 10.0
    %v1145 = vlaneseq
    %v1146 = vshrl.u32 %v1145, 7
    %v1147 = vsub.s32 0, %v1146
    %v1148 = vrot.slane %v617, %v1147
    %1150 = vbcast.lane.b32.xlu0 %v1148, 256
    %v1151 = vpop.permute.xlu0 %1150
    %s1153 = sor.u32 256, 8
    %1154 = vbcast.lane.b32.xlu0 %v1148, %s1153
    %v1155 = vpop.permute.xlu0 %1154
    %s1157 = sor.u32 256, 16
    %1158 = vbcast.lane.b32.xlu0 %v1148, %s1157
    %v1159 = vpop.permute.xlu0 %1158
    %s1161 = sor.u32 256, 24
    %1162 = vbcast.lane.b32.xlu0 %v1148, %s1161
    %v1163 = vpop.permute.xlu0 %1162
    %s1165 = sor.u32 256, 32
    %1166 = vbcast.lane.b32.xlu0 %v1148, %s1165
    %v1167 = vpop.permute.xlu0 %1166
    %s1169 = sor.u32 256, 40
    %1170 = vbcast.lane.b32.xlu0 %v1148, %s1169
    %v1171 = vpop.permute.xlu0 %1170
    %s1173 = sor.u32 256, 48
    %1174 = vbcast.lane.b32.xlu0 %v1148, %s1173
    %v1175 = vpop.permute.xlu0 %1174
    %s1177 = sor.u32 256, 56
    %1178 = vbcast.lane.b32.xlu0 %v1148, %s1177
    %v1179 = vpop.permute.xlu0 %1178
    %s1181 = sor.u32 256, 64
    %1182 = vbcast.lane.b32.xlu0 %v1148, %s1181
    %v1183 = vpop.permute.xlu0 %1182
    %s1185 = sor.u32 256, 72
    %1186 = vbcast.lane.b32.xlu0 %v1148, %s1185
    %v1187 = vpop.permute.xlu0 %1186
    %s1189 = sor.u32 256, 80
    %1190 = vbcast.lane.b32.xlu0 %v1148, %s1189
    %v1191 = vpop.permute.xlu0 %1190
    %s1193 = sor.u32 256, 88
    %1194 = vbcast.lane.b32.xlu0 %v1148, %s1193
    %v1195 = vpop.permute.xlu0 %1194
    %s1197 = sor.u32 256, 96
    %1198 = vbcast.lane.b32.xlu0 %v1148, %s1197
    %v1199 = vpop.permute.xlu0 %1198
    %s1201 = sor.u32 256, 104
    %1202 = vbcast.lane.b32.xlu0 %v1148, %s1201
    %v1203 = vpop.permute.xlu0 %1202
    %s1205 = sor.u32 256, 112
    %1206 = vbcast.lane.b32.xlu0 %v1148, %s1205
    %v1207 = vpop.permute.xlu0 %1206
    %s1209 = sor.u32 256, 120
    %1210 = vbcast.lane.b32.xlu0 %v1148, %s1209
    %v1211 = vpop.permute.xlu0 %1210
    %v1212 = vlaneseq
    %v1213 = vshrl.u32 %v1212, 7
    %v1214 = vsub.s32 0, %v1213
    %v1215 = vrot.slane %v618, %v1214
    %1217 = vbcast.lane.b32.xlu0 %v1215, 256
    %v1218 = vpop.permute.xlu0 %1217
    %s1220 = sor.u32 256, 8
    %1221 = vbcast.lane.b32.xlu0 %v1215, %s1220
    %v1222 = vpop.permute.xlu0 %1221
    %v1223 = vlaneseq
    %v1224 = vshrl.u32 %v1223, 7
    %v1225 = vsub.s32 1, %v1224
    %v1226 = vrot.slane %v617, %v1225
    %1228 = vbcast.lane.b32.xlu0 %v1226, 256
    %v1229 = vpop.permute.xlu0 %1228
    %s1231 = sor.u32 256, 8
    %1232 = vbcast.lane.b32.xlu0 %v1226, %s1231
    %v1233 = vpop.permute.xlu0 %1232
    %s1235 = sor.u32 256, 16
    %1236 = vbcast.lane.b32.xlu0 %v1226, %s1235
    %v1237 = vpop.permute.xlu0 %1236
    %s1239 = sor.u32 256, 24
    %1240 = vbcast.lane.b32.xlu0 %v1226, %s1239
    %v1241 = vpop.permute.xlu0 %1240
    %s1243 = sor.u32 256, 32
    %1244 = vbcast.lane.b32.xlu0 %v1226, %s1243
    %v1245 = vpop.permute.xlu0 %1244
    %s1247 = sor.u32 256, 40
    %1248 = vbcast.lane.b32.xlu0 %v1226, %s1247
    %v1249 = vpop.permute.xlu0 %1248
    %s1251 = sor.u32 256, 48
    %1252 = vbcast.lane.b32.xlu0 %v1226, %s1251
    %v1253 = vpop.permute.xlu0 %1252
    %s1255 = sor.u32 256, 56
    %1256 = vbcast.lane.b32.xlu0 %v1226, %s1255
    %v1257 = vpop.permute.xlu0 %1256
    %s1259 = sor.u32 256, 64
    %1260 = vbcast.lane.b32.xlu0 %v1226, %s1259
    %v1261 = vpop.permute.xlu0 %1260
    %s1263 = sor.u32 256, 72
    %1264 = vbcast.lane.b32.xlu0 %v1226, %s1263
    %v1265 = vpop.permute.xlu0 %1264
    %s1267 = sor.u32 256, 80
    %1268 = vbcast.lane.b32.xlu0 %v1226, %s1267
    %v1269 = vpop.permute.xlu0 %1268
    %s1271 = sor.u32 256, 88
    %1272 = vbcast.lane.b32.xlu0 %v1226, %s1271
    %v1273 = vpop.permute.xlu0 %1272
    %s1275 = sor.u32 256, 96
    %1276 = vbcast.lane.b32.xlu0 %v1226, %s1275
    %v1277 = vpop.permute.xlu0 %1276
    %s1279 = sor.u32 256, 104
    %1280 = vbcast.lane.b32.xlu0 %v1226, %s1279
    %v1281 = vpop.permute.xlu0 %1280
    %s1283 = sor.u32 256, 112
    %1284 = vbcast.lane.b32.xlu0 %v1226, %s1283
    %v1285 = vpop.permute.xlu0 %1284
    %s1287 = sor.u32 256, 120
    %1288 = vbcast.lane.b32.xlu0 %v1226, %s1287
    %v1289 = vpop.permute.xlu0 %1288
    %v1290 = vlaneseq
    %v1291 = vshrl.u32 %v1290, 7
    %v1292 = vsub.s32 1, %v1291
    %v1293 = vrot.slane %v618, %v1292
    %1295 = vbcast.lane.b32.xlu0 %v1293, 256
    %v1296 = vpop.permute.xlu0 %1295
    %s1298 = sor.u32 256, 8
    %1299 = vbcast.lane.b32.xlu0 %v1293, %s1298
    %v1300 = vpop.permute.xlu0 %1299
    %v1337 = vsel %vm1109, %v1151, 0.0
    %v1338 = vsel %vm1110, %v1155, 0.0
    %v1339 = vsel %vm1111, %v1159, 0.0
    %v1340 = vsel %vm1112, %v1163, 0.0
    %v1341 = vsel %vm1113, %v1167, 0.0
    %v1342 = vsel %vm1114, %v1171, 0.0
    %v1343 = vsel %vm1115, %v1175, 0.0
    %v1344 = vsel %vm1116, %v1179, 0.0
    %v1345 = vsel %vm1117, %v1183, 0.0
    %v1346 = vsel %vm1118, %v1187, 0.0
    %v1347 = vsel %vm1119, %v1191, 0.0
    %v1348 = vsel %vm1120, %v1195, 0.0
    %v1349 = vsel %vm1121, %v1199, 0.0
    %v1350 = vsel %vm1122, %v1203, 0.0
    %v1351 = vsel %vm1123, %v1207, 0.0
    %v1352 = vsel %vm1124, %v1211, 0.0
    %v1353 = vsel %vm1125, %v1218, 0.0
    %v1354 = vsel %vm1126, %v1222, 0.0
    %v1355 = vsel %vm1127, %v1229, 0.0
    %v1356 = vsel %vm1128, %v1233, 0.0
    %v1357 = vsel %vm1129, %v1237, 0.0
    %v1358 = vsel %vm1130, %v1241, 0.0
    %v1359 = vsel %vm1131, %v1245, 0.0
    %v1360 = vsel %vm1132, %v1249, 0.0
    %v1361 = vsel %vm1133, %v1253, 0.0
    %v1362 = vsel %vm1134, %v1257, 0.0
    %v1363 = vsel %vm1135, %v1261, 0.0
    %v1364 = vsel %vm1136, %v1265, 0.0
    %v1365 = vsel %vm1137, %v1269, 0.0
    %v1366 = vsel %vm1138, %v1273, 0.0
    %v1367 = vsel %vm1139, %v1277, 0.0
    %v1368 = vsel %vm1140, %v1281, 0.0
    %v1369 = vsel %vm1141, %v1285, 0.0
    %v1370 = vsel %vm1142, %v1289, 0.0
    %v1371 = vsel %vm1143, %v1296, 0.0
    %v1372 = vsel %vm1144, %v1300, 0.0
    %v1373 = vld [vmem:[%s4] sm:$0xff]
    %v1374 = vld [vmem:[%s4 + $0x8] sm:$0xff]
    %v1375 = vld [vmem:[%s4 + $0x10] sm:$0xff]
    %v1376 = vld [vmem:[%s4 + $0x18] sm:$0xff]
    %v1377 = vld [vmem:[%s4 + $0x20] sm:$0xff]
    %v1378 = vld [vmem:[%s4 + $0x28] sm:$0xff]
    %v1379 = vld [vmem:[%s4 + $0x30] sm:$0xff]
    %v1380 = vld [vmem:[%s4 + $0x38] sm:$0xff]
    %v1381 = vld [vmem:[%s4 + $0x40] sm:$0xff]
    %v1382 = vld [vmem:[%s4 + $0x48] sm:$0xff]
    %v1383 = vld [vmem:[%s4 + $0x50] sm:$0xff]
    %v1384 = vld [vmem:[%s4 + $0x58] sm:$0xff]
    %v1385 = vld [vmem:[%s4 + $0x60] sm:$0xff]
    %v1386 = vld [vmem:[%s4 + $0x68] sm:$0xff]
    %v1387 = vld [vmem:[%s4 + $0x70] sm:$0xff]
    %v1388 = vld [vmem:[%s4 + $0x78] sm:$0xff]
    %v1389 = vld [vmem:[%s4 + $0x80] sm:$0xff]
    %v1390 = vld [vmem:[%s4 + $0x88] sm:$0xff]
    %v1391 = vld [vmem:[%s5] sm:$0x1]
    %v1393 = vlaneseq
    %v1394 = vshrl.u32 %v1393, 7
    %v1395 = vsub.s32 0, %v1394
    %v1396 = vrot.slane %v1391, %v1395
    %1434 = vset.pattern.permute.xlu0 0
    %1435 = vperm.xlu0 %1434, %v1337
    %v1436 = vpop.permute.xlu0 %1435
    %1437 = vset.pattern.permute.xlu0 0
    %1438 = vperm.xlu0 %1437, %v1338
    %v1439 = vpop.permute.xlu0 %1438
    %1440 = vset.pattern.permute.xlu0 0
    %1441 = vperm.xlu0 %1440, %v1339
    %v1442 = vpop.permute.xlu0 %1441
    %1443 = vset.pattern.permute.xlu0 0
    %1444 = vperm.xlu0 %1443, %v1340
    %v1445 = vpop.permute.xlu0 %1444
    %1446 = vset.pattern.permute.xlu0 0
    %1447 = vperm.xlu0 %1446, %v1341
    %v1448 = vpop.permute.xlu0 %1447
    %1449 = vset.pattern.permute.xlu0 0
    %1450 = vperm.xlu0 %1449, %v1342
    %v1451 = vpop.permute.xlu0 %1450
    %1452 = vset.pattern.permute.xlu0 0
    %1453 = vperm.xlu0 %1452, %v1343
    %v1454 = vpop.permute.xlu0 %1453
    %1455 = vset.pattern.permute.xlu0 0
    %1456 = vperm.xlu0 %1455, %v1344
    %v1457 = vpop.permute.xlu0 %1456
    %1458 = vset.pattern.permute.xlu0 0
    %1459 = vperm.xlu0 %1458, %v1345
    %v1460 = vpop.permute.xlu0 %1459
    %1461 = vset.pattern.permute.xlu0 0
    %1462 = vperm.xlu0 %1461, %v1346
    %v1463 = vpop.permute.xlu0 %1462
    %1464 = vset.pattern.permute.xlu0 0
    %1465 = vperm.xlu0 %1464, %v1347
    %v1466 = vpop.permute.xlu0 %1465
    %1467 = vset.pattern.permute.xlu0 0
    %1468 = vperm.xlu0 %1467, %v1348
    %v1469 = vpop.permute.xlu0 %1468
    %1470 = vset.pattern.permute.xlu0 0
    %1471 = vperm.xlu0 %1470, %v1349
    %v1472 = vpop.permute.xlu0 %1471
    %1473 = vset.pattern.permute.xlu0 0
    %1474 = vperm.xlu0 %1473, %v1350
    %v1475 = vpop.permute.xlu0 %1474
    %1476 = vset.pattern.permute.xlu0 0
    %1477 = vperm.xlu0 %1476, %v1351
    %v1478 = vpop.permute.xlu0 %1477
    %1479 = vset.pattern.permute.xlu0 0
    %1480 = vperm.xlu0 %1479, %v1352
    %v1481 = vpop.permute.xlu0 %1480
    %1482 = vset.pattern.permute.xlu0 0
    %1483 = vperm.xlu0 %1482, %v1353
    %v1484 = vpop.permute.xlu0 %1483
    %1485 = vset.pattern.permute.xlu0 0
    %1486 = vperm.xlu0 %1485, %v1354
    %v1487 = vpop.permute.xlu0 %1486
    %1488 = vset.pattern.permute.xlu0 0
    %1489 = vperm.xlu0 %1488, %v1355
    %v1490 = vpop.permute.xlu0 %1489
    %1491 = vset.pattern.permute.xlu0 0
    %1492 = vperm.xlu0 %1491, %v1356
    %v1493 = vpop.permute.xlu0 %1492
    %1494 = vset.pattern.permute.xlu0 0
    %1495 = vperm.xlu0 %1494, %v1357
    %v1496 = vpop.permute.xlu0 %1495
    %1497 = vset.pattern.permute.xlu0 0
    %1498 = vperm.xlu0 %1497, %v1358
    %v1499 = vpop.permute.xlu0 %1498
    %1500 = vset.pattern.permute.xlu0 0
    %1501 = vperm.xlu0 %1500, %v1359
    %v1502 = vpop.permute.xlu0 %1501
    %1503 = vset.pattern.permute.xlu0 0
    %1504 = vperm.xlu0 %1503, %v1360
    %v1505 = vpop.permute.xlu0 %1504
    %1506 = vset.pattern.permute.xlu0 0
    %1507 = vperm.xlu0 %1506, %v1361
    %v1508 = vpop.permute.xlu0 %1507
    %1509 = vset.pattern.permute.xlu0 0
    %1510 = vperm.xlu0 %1509, %v1362
    %v1511 = vpop.permute.xlu0 %1510
    %1512 = vset.pattern.permute.xlu0 0
    %1513 = vperm.xlu0 %1512, %v1363
    %v1514 = vpop.permute.xlu0 %1513
    %1515 = vset.pattern.permute.xlu0 0
    %1516 = vperm.xlu0 %1515, %v1364
    %v1517 = vpop.permute.xlu0 %1516
    %1518 = vset.pattern.permute.xlu0 0
    %1519 = vperm.xlu0 %1518, %v1365
    %v1520 = vpop.permute.xlu0 %1519
    %1521 = vset.pattern.permute.xlu0 0
    %1522 = vperm.xlu0 %1521, %v1366
    %v1523 = vpop.permute.xlu0 %1522
    %1524 = vset.pattern.permute.xlu0 0
    %1525 = vperm.xlu0 %1524, %v1367
    %v1526 = vpop.permute.xlu0 %1525
    %1527 = vset.pattern.permute.xlu0 0
    %1528 = vperm.xlu0 %1527, %v1368
    %v1529 = vpop.permute.xlu0 %1528
    %1530 = vset.pattern.permute.xlu0 0
    %1531 = vperm.xlu0 %1530, %v1369
    %v1532 = vpop.permute.xlu0 %1531
    %1533 = vset.pattern.permute.xlu0 0
    %1534 = vperm.xlu0 %1533, %v1370
    %v1535 = vpop.permute.xlu0 %1534
    %1536 = vset.pattern.permute.xlu0 0
    %1537 = vperm.xlu0 %1536, %v1371
    %v1538 = vpop.permute.xlu0 %1537
    %1539 = vset.pattern.permute.xlu0 0
    %1540 = vperm.xlu0 %1539, %v1372
    %v1541 = vpop.permute.xlu0 %1540
    %v1542 = vlaneseq
    %v1543 = vand.u32 %v1542, 127
    %v1544 = vlaneseq
    %v1545 = vshrl.u32 %v1544, 7
    %v1546 = vsub.s32 %v1543, %v1545
    %v1547 = vrot.slane %v1436, %v1546
    %v1548 = vadd.s32 %v1543, 4294967288
    %v1549 = vlaneseq
    %v1550 = vshrl.u32 %v1549, 7
    %v1551 = vsub.s32 %v1548, %v1550
    %v1552 = vrot.slane %v1439, %v1551
    %vm1553 = vcmask 130112
    %v1554 = vsel %vm1553, %v1552, %v1547
    %v1555 = vadd.s32 %v1543, 4294967280
    %v1556 = vlaneseq
    %v1557 = vshrl.u32 %v1556, 7
    %v1558 = vsub.s32 %v1555, %v1557
    %v1559 = vrot.slane %v1442, %v1558
    %vm1560 = vcmask 195712
    %v1561 = vsel %vm1560, %v1559, %v1554
    %v1562 = vadd.s32 %v1543, 4294967272
    %v1563 = vlaneseq
    %v1564 = vshrl.u32 %v1563, 7
    %v1565 = vsub.s32 %v1562, %v1564
    %v1566 = vrot.slane %v1445, %v1565
    %vm1567 = vcmask 261312
    %v1568 = vsel %vm1567, %v1566, %v1561
    %v1569 = vadd.s32 %v1543, 4294967264
    %v1570 = vlaneseq
    %v1571 = vshrl.u32 %v1570, 7
    %v1572 = vsub.s32 %v1569, %v1571
    %v1573 = vrot.slane %v1448, %v1572
    %vm1574 = vcmask 326912
    %v1575 = vsel %vm1574, %v1573, %v1568
    %v1576 = vadd.s32 %v1543, 4294967256
    %v1577 = vlaneseq
    %v1578 = vshrl.u32 %v1577, 7
    %v1579 = vsub.s32 %v1576, %v1578
    %v1580 = vrot.slane %v1451, %v1579
    %vm1581 = vcmask 392512
    %v1582 = vsel %vm1581, %v1580, %v1575
    %v1583 = vadd.s32 %v1543, 4294967248
    %v1584 = vlaneseq
    %v1585 = vshrl.u32 %v1584, 7
    %v1586 = vsub.s32 %v1583, %v1585
    %v1587 = vrot.slane %v1454, %v1586
    %vm1588 = vcmask 458112
    %v1589 = vsel %vm1588, %v1587, %v1582
    %v1590 = vadd.s32 %v1543, 4294967240
    %v1591 = vlaneseq
    %v1592 = vshrl.u32 %v1591, 7
    %v1593 = vsub.s32 %v1590, %v1592
    %v1594 = vrot.slane %v1457, %v1593
    %vm1595 = vcmask 523712
    %v1596 = vsel %vm1595, %v1594, %v1589
    %v1597 = vadd.s32 %v1543, 4294967232
    %v1598 = vlaneseq
    %v1599 = vshrl.u32 %v1598, 7
    %v1600 = vsub.s32 %v1597, %v1599
    %v1601 = vrot.slane %v1460, %v1600
    %vm1602 = vcmask 589312
    %v1603 = vsel %vm1602, %v1601, %v1596
    %v1604 = vadd.s32 %v1543, 4294967224
    %v1605 = vlaneseq
    %v1606 = vshrl.u32 %v1605, 7
    %v1607 = vsub.s32 %v1604, %v1606
    %v1608 = vrot.slane %v1463, %v1607
    %vm1609 = vcmask 654912
    %v1610 = vsel %vm1609, %v1608, %v1603
    %v1611 = vadd.s32 %v1543, 4294967216
    %v1612 = vlaneseq
    %v1613 = vshrl.u32 %v1612, 7
    %v1614 = vsub.s32 %v1611, %v1613
    %v1615 = vrot.slane %v1466, %v1614
    %vm1616 = vcmask 720512
    %v1617 = vsel %vm1616, %v1615, %v1610
    %v1618 = vadd.s32 %v1543, 4294967208
    %v1619 = vlaneseq
    %v1620 = vshrl.u32 %v1619, 7
    %v1621 = vsub.s32 %v1618, %v1620
    %v1622 = vrot.slane %v1469, %v1621
    %vm1623 = vcmask 786112
    %v1624 = vsel %vm1623, %v1622, %v1617
    %v1625 = vadd.s32 %v1543, 4294967200
    %v1626 = vlaneseq
    %v1627 = vshrl.u32 %v1626, 7
    %v1628 = vsub.s32 %v1625, %v1627
    %v1629 = vrot.slane %v1472, %v1628
    %vm1630 = vcmask 851712
    %v1631 = vsel %vm1630, %v1629, %v1624
    %v1632 = vadd.s32 %v1543, 4294967192
    %v1633 = vlaneseq
    %v1634 = vshrl.u32 %v1633, 7
    %v1635 = vsub.s32 %v1632, %v1634
    %v1636 = vrot.slane %v1475, %v1635
    %vm1637 = vcmask 917312
    %v1638 = vsel %vm1637, %v1636, %v1631
    %v1639 = vadd.s32 %v1543, 4294967184
    %v1640 = vlaneseq
    %v1641 = vshrl.u32 %v1640, 7
    %v1642 = vsub.s32 %v1639, %v1641
    %v1643 = vrot.slane %v1478, %v1642
    %vm1644 = vcmask 982912
    %v1645 = vsel %vm1644, %v1643, %v1638
    %v1646 = vadd.s32 %v1543, 4294967176
    %v1647 = vlaneseq
    %v1648 = vshrl.u32 %v1647, 7
    %v1649 = vsub.s32 %v1646, %v1648
    %v1650 = vrot.slane %v1481, %v1649
    %vm1651 = vcmask 1048512
    %v1652 = vsel %vm1651, %v1650, %v1645
    %v1653 = vlaneseq
    %v1654 = vshrl.u32 %v1653, 7
    %v1655 = vsub.s32 %v1543, %v1654
    %v1656 = vrot.slane %v1484, %v1655
    %v1657 = vlaneseq
    %v1658 = vshrl.u32 %v1657, 7
    %v1659 = vsub.s32 %v1548, %v1658
    %v1660 = vrot.slane %v1487, %v1659
    %v1661 = vsel %vm1553, %v1660, %v1656
    %v1662 = vlaneseq
    %v1663 = vshrl.u32 %v1662, 7
    %v1664 = vsub.s32 %v1543, %v1663
    %v1665 = vrot.slane %v1490, %v1664
    %v1666 = vlaneseq
    %v1667 = vshrl.u32 %v1666, 7
    %v1668 = vsub.s32 %v1548, %v1667
    %v1669 = vrot.slane %v1493, %v1668
    %v1670 = vsel %vm1553, %v1669, %v1665
    %v1671 = vlaneseq
    %v1672 = vshrl.u32 %v1671, 7
    %v1673 = vsub.s32 %v1555, %v1672
    %v1674 = vrot.slane %v1496, %v1673
    %v1675 = vsel %vm1560, %v1674, %v1670
    %v1676 = vlaneseq
    %v1677 = vshrl.u32 %v1676, 7
    %v1678 = vsub.s32 %v1562, %v1677
    %v1679 = vrot.slane %v1499, %v1678
    %v1680 = vsel %vm1567, %v1679, %v1675
    %v1681 = vlaneseq
    %v1682 = vshrl.u32 %v1681, 7
    %v1683 = vsub.s32 %v1569, %v1682
    %v1684 = vrot.slane %v1502, %v1683
    %v1685 = vsel %vm1574, %v1684, %v1680
    %v1686 = vlaneseq
    %v1687 = vshrl.u32 %v1686, 7
    %v1688 = vsub.s32 %v1576, %v1687
    %v1689 = vrot.slane %v1505, %v1688
    %v1690 = vsel %vm1581, %v1689, %v1685
    %v1691 = vlaneseq
    %v1692 = vshrl.u32 %v1691, 7
    %v1693 = vsub.s32 %v1583, %v1692
    %v1694 = vrot.slane %v1508, %v1693
    %v1695 = vsel %vm1588, %v1694, %v1690
    %v1696 = vlaneseq
    %v1697 = vshrl.u32 %v1696, 7
    %v1698 = vsub.s32 %v1590, %v1697
    %v1699 = vrot.slane %v1511, %v1698
    %v1700 = vsel %vm1595, %v1699, %v1695
    %v1701 = vlaneseq
    %v1702 = vshrl.u32 %v1701, 7
    %v1703 = vsub.s32 %v1597, %v1702
    %v1704 = vrot.slane %v1514, %v1703
    %v1705 = vsel %vm1602, %v1704, %v1700
    %v1706 = vlaneseq
    %v1707 = vshrl.u32 %v1706, 7
    %v1708 = vsub.s32 %v1604, %v1707
    %v1709 = vrot.slane %v1517, %v1708
    %v1710 = vsel %vm1609, %v1709, %v1705
    %v1711 = vlaneseq
    %v1712 = vshrl.u32 %v1711, 7
    %v1713 = vsub.s32 %v1611, %v1712
    %v1714 = vrot.slane %v1520, %v1713
    %v1715 = vsel %vm1616, %v1714, %v1710
    %v1716 = vlaneseq
    %v1717 = vshrl.u32 %v1716, 7
    %v1718 = vsub.s32 %v1618, %v1717
    %v1719 = vrot.slane %v1523, %v1718
    %v1720 = vsel %vm1623, %v1719, %v1715
    %v1721 = vlaneseq
    %v1722 = vshrl.u32 %v1721, 7
    %v1723 = vsub.s32 %v1625, %v1722
    %v1724 = vrot.slane %v1526, %v1723
    %v1725 = vsel %vm1630, %v1724, %v1720
    %v1726 = vlaneseq
    %v1727 = vshrl.u32 %v1726, 7
    %v1728 = vsub.s32 %v1632, %v1727
    %v1729 = vrot.slane %v1529, %v1728
    %v1730 = vsel %vm1637, %v1729, %v1725
    %v1731 = vlaneseq
    %v1732 = vshrl.u32 %v1731, 7
    %v1733 = vsub.s32 %v1639, %v1732
    %v1734 = vrot.slane %v1532, %v1733
    %v1735 = vsel %vm1644, %v1734, %v1730
    %v1736 = vlaneseq
    %v1737 = vshrl.u32 %v1736, 7
    %v1738 = vsub.s32 %v1646, %v1737
    %v1739 = vrot.slane %v1535, %v1738
    %v1740 = vsel %vm1651, %v1739, %v1735
    %v1741 = vlaneseq
    %v1742 = vshrl.u32 %v1741, 7
    %v1743 = vsub.s32 %v1543, %v1742
    %v1744 = vrot.slane %v1538, %v1743
    %v1745 = vlaneseq
    %v1746 = vshrl.u32 %v1745, 7
    %v1747 = vsub.s32 %v1548, %v1746
    %v1748 = vrot.slane %v1541, %v1747
    %v1749 = vsel %vm1553, %v1748, %v1744
    %vm1750 = vcmask 1041409
    %v1751 = vsel %vm1750, %v1740, %v1652
    %v1752 = vsel %vm1750, %v1749, %v1661
    %v1754 = vsel %vm964, %v1752, 0
    %1756 = vmatprep.subr.mxu0 0.0
    %1757 = vmatpush1.msra.mxu0 %v1373
    %1758 = vmatprep.subr.mxu0 0.0
    %1759 = vmatpush1.msra.mxu0 %v1374
    %1760 = vmatprep.subr.mxu0 0.0
    %1761 = vmatpush1.msra.mxu0 %v1375
    %1762 = vmatprep.subr.mxu0 0.0
    %1763 = vmatpush1.msra.mxu0 %v1376
    %1764 = vmatprep.subr.mxu0 0.0
    %1765 = vmatpush1.msra.mxu0 %v1377
    %1766 = vmatprep.subr.mxu0 0.0
    %1767 = vmatpush1.msra.mxu0 %v1378
    %1768 = vmatprep.subr.mxu0 0.0
    %1769 = vmatpush1.msra.mxu0 %v1379
    %1770 = vmatprep.subr.mxu0 0.0
    %1771 = vmatpush1.msra.mxu0 %v1380
    %1772 = vmatprep.subr.mxu0 0.0
    %1773 = vmatpush1.msra.mxu0 %v1381
    %1774 = vmatprep.subr.mxu0 0.0
    %1775 = vmatpush1.msra.mxu0 %v1382
    %1776 = vmatprep.subr.mxu0 0.0
    %1777 = vmatpush1.msra.mxu0 %v1383
    %1778 = vmatprep.subr.mxu0 0.0
    %1779 = vmatpush1.msra.mxu0 %v1384
    %1780 = vmatprep.subr.mxu0 0.0
    %1781 = vmatpush1.msra.mxu0 %v1385
    %1782 = vmatprep.subr.mxu0 0.0
    %1783 = vmatpush1.msra.mxu0 %v1386
    %1784 = vmatprep.subr.mxu0 0.0
    %1785 = vmatpush1.msra.mxu0 %v1387
    %1786 = vmatprep.subr.mxu0 0.0
    %1787 = vmatpush1.msra.mxu0 %v1388
    %1788 = vmatprep.subr.mxu0 0.0
    %1789 = vmatpush1.msra.mxu0 %v1389
    %1790 = vmatprep.subr.mxu0 0.0
    %1791 = vmatpush1.msra.mxu0 %v1390
    %1792 = vmatprep.subr.mxu0 0.0
    %1793 = vmatpush1.msra.mxu0 0.0
    %1794 = vmatprep.subr.mxu0 0.0
    %1795 = vmatpush1.msra.mxu0 0.0
    %1796 = vmatprep.subr.mxu0 0.0
    %1797 = vmatpush1.msra.mxu0 0.0
    %1798 = vmatprep.subr.mxu0 0.0
    %1799 = vmatpush1.msra.mxu0 0.0
    %1800 = vmatprep.subr.mxu0 0.0
    %1801 = vmatpush1.msra.mxu0 0.0
    %1802 = vmatprep.subr.mxu0 0.0
    %1803 = vmatpush1.msra.mxu0 0.0
    %1804 = vmatprep.subr.mxu0 0.0
    %1805 = vmatpush1.msra.mxu0 0.0
    %1806 = vmatprep.subr.mxu0 0.0
    %1807 = vmatpush1.msra.mxu0 0.0
    %1808 = vmatprep.subr.mxu0 0.0
    %1809 = vmatpush1.msra.mxu0 0.0
    %1810 = vmatprep.subr.mxu0 0.0
    %1811 = vmatpush1.msra.mxu0 0.0
    %1812 = vmatprep.subr.mxu0 0.0
    %1813 = vmatpush1.msra.mxu0 0.0
    %1814 = vmatprep.subr.mxu0 0.0
    %1815 = vmatpush1.msra.mxu0 0.0
    %1816 = vmatprep.subr.mxu0 0.0
    %1817 = vmatpush1.msra.mxu0 0.0
    %1818 = vmatprep.subr.mxu0 0.0
    %1819 = vmatpush1.msra.mxu0 0.0
    %1820 = vmatprep.mubr.f32.mxu0 %v1754
    %1821 = vmatmul.mubr.f32.gmra.mrb[0].mxu0 %v1751
    %v1822 = vpop.f32.mrb[0].mxu0
    %v1823 = vadd.f32 %v1396, %v1822
    %v1824 = vpop.f32.mrb[0].mxu0
    %1825 = vdwg.mxu0
    %v1828 = vunpack.c.l.s4 1966171168
    %v1829 = vunpack.c.0.s8 %v1828
    %v1830 = vlaneseq
    %v1831 = vshrl.u32 %v1830, 7
    %v1832 = vsub.s32 %v1829, %v1831
    %v1833 = vrot.slane %v1823, %v1832
    %v1834 = vcombine.high %v1833, %v1833
    %v1836 = vunpack.c.l.s4 1966171168
    %v1837 = vunpack.c.0.s8 %v1836
    %v1838 = vlaneseq
    %v1839 = vshrl.u32 %v1838, 7
    %v1840 = vsub.s32 %v1837, %v1839
    %v1841 = vrot.slane %v1833, %v1840
    %v1843 = vunpack.c.l.s4 1966171168
    %v1844 = vunpack.c.0.s8 %v1843
    %v1845 = vlaneseq
    %v1846 = vshrl.u32 %v1845, 7
    %v1847 = vsub.s32 %v1844, %v1846
    %v1848 = vrot.slane %v1834, %v1847
    %v1849 = vlaneseq
    %v1850 = vshrl.u32 %v1849, 7
    %v1851 = vsub.s32 0, %v1850
    %v1852 = vrot.slane %v1823, %v1851
    %1854 = vbcast.lane.b32.xlu0 %v1852, 256
    %v1855 = vpop.permute.xlu0 %1854
    %s1857 = sor.u32 256, 8
    %1858 = vbcast.lane.b32.xlu0 %v1852, %s1857
    %v1859 = vpop.permute.xlu0 %1858
    %s1861 = sor.u32 256, 16
    %1862 = vbcast.lane.b32.xlu0 %v1852, %s1861
    %v1863 = vpop.permute.xlu0 %1862
    %s1865 = sor.u32 256, 24
    %1866 = vbcast.lane.b32.xlu0 %v1852, %s1865
    %v1867 = vpop.permute.xlu0 %1866
    %v1868 = vlaneseq
    %v1869 = vshrl.u32 %v1868, 7
    %v1870 = vsub.s32 1, %v1869
    %v1871 = vrot.slane %v1823, %v1870
    %1873 = vbcast.lane.b32.xlu0 %v1871, 256
    %v1874 = vpop.permute.xlu0 %1873
    %s1876 = sor.u32 256, 8
    %1877 = vbcast.lane.b32.xlu0 %v1871, %s1876
    %v1878 = vpop.permute.xlu0 %1877
    %s1880 = sor.u32 256, 16
    %1881 = vbcast.lane.b32.xlu0 %v1871, %s1880
    %v1882 = vpop.permute.xlu0 %1881
    %s1884 = sor.u32 256, 24
    %1885 = vbcast.lane.b32.xlu0 %v1871, %s1884
    %v1886 = vpop.permute.xlu0 %1885
    %v1887 = vlaneseq
    %v1888 = vshrl.u32 %v1887, 7
    %v1889 = vsub.s32 0, %v1888
    %v1890 = vrot.slane %v1841, %v1889
    %v1891 = vlaneseq
    %v1892 = vshrl.u32 %v1891, 7
    %v1893 = vsub.s32 0, %v1892
    %v1894 = vrot.slane %v1848, %v1893
    %vm1897 = vcmp.gt.f32.partialorder %v1890, %v1855
    %vm1898 = vcmp.gt.f32.partialorder %v1890, %v1859
    %vm1899 = vcmp.gt.f32.partialorder %v1890, %v1863
    %vm1900 = vcmp.gt.f32.partialorder %v1890, %v1867
    %vm1901 = vcmp.gt.f32.partialorder %v1894, %v1874
    %vm1902 = vcmp.gt.f32.partialorder %v1894, %v1878
    %vm1903 = vcmp.gt.f32.partialorder %v1894, %v1882
    %vm1904 = vcmp.gt.f32.partialorder %v1894, %v1886
    %v1905 = vsel %vm1897, 1.0, 0.0
    %v1906 = vsel %vm1898, 1.0, 0.0
    %v1907 = vsel %vm1899, 1.0, 0.0
    %v1908 = vsel %vm1900, 1.0, 0.0
    %v1909 = vsel %vm1901, 1.0, 0.0
    %v1910 = vsel %vm1902, 1.0, 0.0
    %v1911 = vsel %vm1903, 1.0, 0.0
    %v1912 = vsel %vm1904, 1.0, 0.0
    %vm1913 = vcmask 261120
    %v1914 = vsel %vm1913, %v1905, 0.0
    %1915 = vadd.xlane.f32.xlu0 %v1914
    %v1916 = vpop.xlane.xlu0 %1915
    %v1917 = vsel %vm1913, %v1906, 0.0
    %1918 = vadd.xlane.f32.xlu0 %v1917
    %v1919 = vpop.xlane.xlu0 %1918
    %v1920 = vsel %vm1913, %v1907, 0.0
    %1921 = vadd.xlane.f32.xlu0 %v1920
    %v1922 = vpop.xlane.xlu0 %1921
    %v1923 = vsel %vm1913, %v1908, 0.0
    %1924 = vadd.xlane.f32.xlu0 %v1923
    %v1925 = vpop.xlane.xlu0 %1924
    %v1926 = vsel %vm1913, %v1909, 0.0
    %1927 = vadd.xlane.f32.xlu0 %v1926
    %v1928 = vpop.xlane.xlu0 %1927
    %v1929 = vsel %vm1913, %v1910, 0.0
    %1930 = vadd.xlane.f32.xlu0 %v1929
    %v1931 = vpop.xlane.xlu0 %1930
    %v1932 = vsel %vm1913, %v1911, 0.0
    %1933 = vadd.xlane.f32.xlu0 %v1932
    %v1934 = vpop.xlane.xlu0 %1933
    %v1935 = vsel %vm1913, %v1912, 0.0
    %1936 = vadd.xlane.f32.xlu0 %v1935
    %v1937 = vpop.xlane.xlu0 %1936
    %vm1938 = vcmp.lt.f32.partialorder %v1916, 8.0
    %vm1939 = vcmp.lt.f32.partialorder %v1919, 8.0
    %vm1940 = vcmp.lt.f32.partialorder %v1922, 8.0
    %vm1941 = vcmp.lt.f32.partialorder %v1925, 8.0
    %vm1942 = vcmp.lt.f32.partialorder %v1928, 8.0
    %vm1943 = vcmp.lt.f32.partialorder %v1931, 8.0
    %vm1944 = vcmp.lt.f32.partialorder %v1934, 8.0
    %vm1945 = vcmp.lt.f32.partialorder %v1937, 8.0
    %v1946 = vlaneseq
    %v1947 = vshrl.u32 %v1946, 7
    %v1948 = vsub.s32 0, %v1947
    %v1949 = vrot.slane %v1823, %v1948
    %1951 = vbcast.lane.b32.xlu0 %v1949, 256
    %v1952 = vpop.permute.xlu0 %1951
    %s1954 = sor.u32 256, 8
    %1955 = vbcast.lane.b32.xlu0 %v1949, %s1954
    %v1956 = vpop.permute.xlu0 %1955
    %s1958 = sor.u32 256, 16
    %1959 = vbcast.lane.b32.xlu0 %v1949, %s1958
    %v1960 = vpop.permute.xlu0 %1959
    %s1962 = sor.u32 256, 24
    %1963 = vbcast.lane.b32.xlu0 %v1949, %s1962
    %v1964 = vpop.permute.xlu0 %1963
    %v1965 = vlaneseq
    %v1966 = vshrl.u32 %v1965, 7
    %v1967 = vsub.s32 1, %v1966
    %v1968 = vrot.slane %v1823, %v1967
    %1970 = vbcast.lane.b32.xlu0 %v1968, 256
    %v1971 = vpop.permute.xlu0 %1970
    %s1973 = sor.u32 256, 8
    %1974 = vbcast.lane.b32.xlu0 %v1968, %s1973
    %v1975 = vpop.permute.xlu0 %1974
    %s1977 = sor.u32 256, 16
    %1978 = vbcast.lane.b32.xlu0 %v1968, %s1977
    %v1979 = vpop.permute.xlu0 %1978
    %s1981 = sor.u32 256, 24
    %1982 = vbcast.lane.b32.xlu0 %v1968, %s1981
    %v1983 = vpop.permute.xlu0 %1982
    %v1992 = vsel %vm1938, %v1952, 0.0
    %v1993 = vsel %vm1939, %v1956, 0.0
    %v1994 = vsel %vm1940, %v1960, 0.0
    %v1995 = vsel %vm1941, %v1964, 0.0
    %v1996 = vsel %vm1942, %v1971, 0.0
    %v1997 = vsel %vm1943, %v1975, 0.0
    %v1998 = vsel %vm1944, %v1979, 0.0
    %v1999 = vsel %vm1945, %v1983, 0.0
    %v2000 = vld [vmem:[%s6] sm:$0xff]
    %v2001 = vld [vmem:[%s6 + $0x8] sm:$0xff]
    %v2002 = vld [vmem:[%s6 + $0x10] sm:$0xff]
    %v2003 = vld [vmem:[%s6 + $0x18] sm:$0xff]
    %v2004 = vld [vmem:[%s7] sm:$0x1]
    %v2006 = vlaneseq
    %v2007 = vshrl.u32 %v2006, 7
    %v2008 = vsub.s32 0, %v2007
    %v2009 = vrot.slane %v2004, %v2008
    %2019 = vset.pattern.permute.xlu0 0
    %2020 = vperm.xlu0 %2019, %v1992
    %v2021 = vpop.permute.xlu0 %2020
    %2022 = vset.pattern.permute.xlu0 0
    %2023 = vperm.xlu0 %2022, %v1993
    %v2024 = vpop.permute.xlu0 %2023
    %2025 = vset.pattern.permute.xlu0 0
    %2026 = vperm.xlu0 %2025, %v1994
    %v2027 = vpop.permute.xlu0 %2026
    %2028 = vset.pattern.permute.xlu0 0
    %2029 = vperm.xlu0 %2028, %v1995
    %v2030 = vpop.permute.xlu0 %2029
    %2031 = vset.pattern.permute.xlu0 0
    %2032 = vperm.xlu0 %2031, %v1996
    %v2033 = vpop.permute.xlu0 %2032
    %2034 = vset.pattern.permute.xlu0 0
    %2035 = vperm.xlu0 %2034, %v1997
    %v2036 = vpop.permute.xlu0 %2035
    %2037 = vset.pattern.permute.xlu0 0
    %2038 = vperm.xlu0 %2037, %v1998
    %v2039 = vpop.permute.xlu0 %2038
    %2040 = vset.pattern.permute.xlu0 0
    %2041 = vperm.xlu0 %2040, %v1999
    %v2042 = vpop.permute.xlu0 %2041
    %v2043 = vlaneseq
    %v2044 = vshrl.u32 %v2043, 7
    %v2045 = vsub.s32 %v1543, %v2044
    %v2046 = vrot.slane %v2021, %v2045
    %v2047 = vlaneseq
    %v2048 = vshrl.u32 %v2047, 7
    %v2049 = vsub.s32 %v1548, %v2048
    %v2050 = vrot.slane %v2024, %v2049
    %v2051 = vsel %vm1553, %v2050, %v2046
    %v2052 = vlaneseq
    %v2053 = vshrl.u32 %v2052, 7
    %v2054 = vsub.s32 %v1555, %v2053
    %v2055 = vrot.slane %v2027, %v2054
    %v2056 = vsel %vm1560, %v2055, %v2051
    %v2057 = vlaneseq
    %v2058 = vshrl.u32 %v2057, 7
    %v2059 = vsub.s32 %v1562, %v2058
    %v2060 = vrot.slane %v2030, %v2059
    %v2061 = vsel %vm1567, %v2060, %v2056
    %v2062 = vlaneseq
    %v2063 = vshrl.u32 %v2062, 7
    %v2064 = vsub.s32 %v1543, %v2063
    %v2065 = vrot.slane %v2033, %v2064
    %v2066 = vlaneseq
    %v2067 = vshrl.u32 %v2066, 7
    %v2068 = vsub.s32 %v1548, %v2067
    %v2069 = vrot.slane %v2036, %v2068
    %v2070 = vsel %vm1553, %v2069, %v2065
    %v2071 = vlaneseq
    %v2072 = vshrl.u32 %v2071, 7
    %v2073 = vsub.s32 %v1555, %v2072
    %v2074 = vrot.slane %v2039, %v2073
    %v2075 = vsel %vm1560, %v2074, %v2070
    %v2076 = vlaneseq
    %v2077 = vshrl.u32 %v2076, 7
    %v2078 = vsub.s32 %v1562, %v2077
    %v2079 = vrot.slane %v2042, %v2078
    %v2080 = vsel %vm1567, %v2079, %v2075
    %v2081 = vsel %vm1750, %v2080, %v2061
    %v2082 = vsel %vm1913, %v2081, 0
    %2084 = vmatprep.subr.mxu0 0.0
    %2085 = vmatpush1.msra.mxu0 %v2000
    %2086 = vmatprep.subr.mxu0 0.0
    %2087 = vmatpush1.msra.mxu0 %v2001
    %2088 = vmatprep.subr.mxu0 0.0
    %2089 = vmatpush1.msra.mxu0 %v2002
    %2090 = vmatprep.subr.mxu0 0.0
    %2091 = vmatpush1.msra.mxu0 %v2003
    %2092 = vmatprep.subr.mxu0 0.0
    %2093 = vmatpush1.msra.mxu0 0.0
    %2094 = vmatprep.subr.mxu0 0.0
    %2095 = vmatpush1.msra.mxu0 0.0
    %2096 = vmatprep.subr.mxu0 0.0
    %2097 = vmatpush1.msra.mxu0 0.0
    %2098 = vmatprep.subr.mxu0 0.0
    %2099 = vmatpush1.msra.mxu0 0.0
    %2100 = vmatprep.subr.mxu0 0.0
    %2101 = vmatpush1.msra.mxu0 0.0
    %2102 = vmatprep.subr.mxu0 0.0
    %2103 = vmatpush1.msra.mxu0 0.0
    %2104 = vmatprep.subr.mxu0 0.0
    %2105 = vmatpush1.msra.mxu0 0.0
    %2106 = vmatprep.subr.mxu0 0.0
    %2107 = vmatpush1.msra.mxu0 0.0
    %2108 = vmatprep.subr.mxu0 0.0
    %2109 = vmatpush1.msra.mxu0 0.0
    %2110 = vmatprep.subr.mxu0 0.0
    %2111 = vmatpush1.msra.mxu0 0.0
    %2112 = vmatprep.subr.mxu0 0.0
    %2113 = vmatpush1.msra.mxu0 0.0
    %2114 = vmatprep.subr.mxu0 0.0
    %2115 = vmatpush1.msra.mxu0 0.0
    %2116 = vmatprep.subr.mxu0 0.0
    %2117 = vmatpush1.msra.mxu0 0.0
    %2118 = vmatprep.subr.mxu0 0.0
    %2119 = vmatpush1.msra.mxu0 0.0
    %2120 = vmatprep.subr.mxu0 0.0
    %2121 = vmatpush1.msra.mxu0 0.0
    %2122 = vmatprep.subr.mxu0 0.0
    %2123 = vmatpush1.msra.mxu0 0.0
    %2124 = vmatprep.subr.mxu0 0.0
    %2125 = vmatpush1.msra.mxu0 0.0
    %2126 = vmatprep.subr.mxu0 0.0
    %2127 = vmatpush1.msra.mxu0 0.0
    %2128 = vmatprep.subr.mxu0 0.0
    %2129 = vmatpush1.msra.mxu0 0.0
    %2130 = vmatprep.subr.mxu0 0.0
    %2131 = vmatpush1.msra.mxu0 0.0
    %2132 = vmatprep.subr.mxu0 0.0
    %2133 = vmatpush1.msra.mxu0 0.0
    %2134 = vmatprep.subr.mxu0 0.0
    %2135 = vmatpush1.msra.mxu0 0.0
    %2136 = vmatprep.subr.mxu0 0.0
    %2137 = vmatpush1.msra.mxu0 0.0
    %2138 = vmatprep.subr.mxu0 0.0
    %2139 = vmatpush1.msra.mxu0 0.0
    %2140 = vmatprep.subr.mxu0 0.0
    %2141 = vmatpush1.msra.mxu0 0.0
    %2142 = vmatprep.subr.mxu0 0.0
    %2143 = vmatpush1.msra.mxu0 0.0
    %2144 = vmatprep.subr.mxu0 0.0
    %2145 = vmatpush1.msra.mxu0 0.0
    %2146 = vmatprep.subr.mxu0 0.0
    %2147 = vmatpush1.msra.mxu0 0.0
    %2148 = vmatprep.mubr.f32.mxu0 0.0
    %2149 = vmatmul.mubr.f32.gmra.mrb[0].mxu0 %v2082
    %v2150 = vpop.f32.mrb[0].mxu0
    %v2151 = vadd.f32 %v2009, %v2150
    %v2152 = vpop.f32.mrb[0].mxu0
    %2153 = vdwg.mxu0
    %vm2154 = vcmask 74752
    %v2155 = vsel %vm2154, %v2151, -inf
    %2156 = vmax.xlane.f32.xlu0 %v2155
    %v2157 = vpop.xlane.xlu0 %2156
    %v2158 = vsub.f32 %v2151, %v2157
    %v2159 = vmul.f32 %v2158, 1.442695
    %v2160 = vpow.pop %v2159
    %v2161 = vsel %vm2154, %v2160, 0.0
    %2162 = vadd.xlane.f32.xlu0 %v2161
    %v2163 = vpop.xlane.xlu0 %2162
    %v2164 = vlog2.pop %v2163
    %v2165 = vmul.f32 %v2164, 0.6931472
    %v2166 = vadd.f32 %v2165, %v2157
    %v2167 = vsub.f32 %v2151, %v2166
    %2168 = vst.msk [vmem:[#allocation2] sm:$0x3] %vm2154, %v2167
    // Predicated region
    $region34: #{sparse_net_forward.1} parent=1 // pred_check
      _
    $region35: #{sparse_net_forward.1} parent=1 // pred_check_branch
      %2170 = sbr.rel (0) target = $region37
    $region36: #{sparse_net_forward.1} parent=1 // pred_region
      %s2172 = ssub.s32 32, 32
      %2173 = vsyncadd [#allocation3], %s2172
      %s2175 = sshll.u32 [#allocation2], 4
      %s2176 = int_to_ptr.vmem [resolvable:$true] %s2175
      %2178 = dma.vmem_to_hbm [thread:$0]  %s2176, 32, %s8, [#allocation3]
    $region37: #{sparse_net_forward.1} parent=1 // pred_fallthru
      _
    // Predicated region
    $region38: #{sparse_net_forward.1} parent=1 // pred_check
      _
    $region39: #{sparse_net_forward.1} parent=1 // pred_check_branch
      %2180 = sbr.rel (0) target = $region41
    $region40: #{sparse_net_forward.1} parent=1 // pred_region
      %2181 = dma.done [#allocation3], 32
    $region41: #{sparse_net_forward.1} parent=1 // pred_fallthru
      _
    %2182 = vsyncpa [#allocation3], 1

</llo_original>
